<compile_context>
chip_gen: v5e
topology: v5e:2x2
jax: 0.10.0
libtpu: 0.0.40
codegen_flags: <defaults>
</compile_context>

<pallas_src>
import functools

import jax
import jax.numpy as jnp
from jax.experimental import pallas as pl
from jax.experimental.pallas import tpu as pltpu


# ----------------------------- capability / budget helpers -----------------------------


@functools.lru_cache(maxsize=None)
def _vmem_limit_bytes():
    # Explicit VMEM budget: the default scoped limits (16 MiB v5e / 32 MiB v6e,v7x) are
    # too small for resident QKV/FFN weights at realistic d_model.  Use ~3/4 of physical.
    cap = 64 * 1024 * 1024
    try:
        cap = int(getattr(pltpu.get_tpu_info(), "vmem_capacity_bytes", cap))
    except Exception:
        pass
    return max(min((cap * 3) // 4, 96 * 1024 * 1024), 32 * 1024 * 1024)


def _compiler_params(n_grid_axes):
    return pltpu.CompilerParams(
        dimension_semantics=("parallel",) * n_grid_axes,
        vmem_limit_bytes=_vmem_limit_bytes(),
    )


@functools.lru_cache(maxsize=None)
def _buffered_one_ok():
    # pl.Buffered(1) single-buffers grid-invariant (weight) blocks, halving their VMEM
    # footprint.  Probe once (compile + numeric check against a streaming input) and fall
    # back to default double-buffering if this runtime rejects or miscompiles it.
    def k(x_ref, w_ref, o_ref):
        o_ref[...] = x_ref[...] + w_ref[...]

    try:
        x = jnp.arange(32 * 128, dtype=jnp.float32).reshape(32, 128)
        w = jnp.full((8, 128), 3.0, jnp.float32)
        out = pl.pallas_call(
            k,
            out_shape=jax.ShapeDtypeStruct((32, 128), jnp.float32),
            grid=(4,),
            in_specs=[
                pl.BlockSpec((8, 128), lambda i: (i, 0)),
                pl.BlockSpec((8, 128), lambda i: (0, 0), pipeline_mode=pl.Buffered(1)),
            ],
            out_specs=pl.BlockSpec((8, 128), lambda i: (i, 0)),
        )(x, w)
        return bool(jnp.allclose(jax.block_until_ready(out), x + 3.0))
    except Exception:
        return False


def _const_spec(shape):
    # Grid-invariant block (weights / biases / LN params): stays VMEM-resident; single
    # buffered where supported.
    index_map = lambda *_: (0,) * len(shape)
    if _buffered_one_ok():
        return pl.BlockSpec(shape, index_map, pipeline_mode=pl.Buffered(1))
    return pl.BlockSpec(shape, index_map)


def _row_tile(n):
    # Mem-bound scaling (measured, v6e): 256-row tiles ~63% of HBM roofline, 512 ~85%.
    # Keep 256 where the VMEM budget is small (v7x).  Partial last tiles are fine: rows
    # are independent in every kernel and reductions are only along the feature dim.
    target = 512 if _vmem_limit_bytes() >= 64 * 1024 * 1024 else 256
    return n if n <= target else target


# ----------------------------------- Pallas kernels -------------------------------------


def _matmul_bias_kernel(x_ref, w_ref, b_ref, o_ref):
    # o = x @ w + b ; x cast to bf16 for the MXU (w is already bf16), accumulate in f32.
    x = x_ref[...].astype(jnp.bfloat16)
    y = jnp.dot(x, w_ref[...], preferred_element_type=jnp.float32) + b_ref[...]
    o_ref[...] = y.astype(o_ref.dtype)


def _proj_add_ln_kernel(x_ref, res_ref, w_ref, b_ref, g_ref, beta_ref, o_ref):
    # o = LayerNorm(res + (x @ w + b)); bf16 MXU matmul, f32 residual/LN statistics.
    x = x_ref[...].astype(jnp.bfloat16)
    y = jnp.dot(x, w_ref[...], preferred_element_type=jnp.float32) + b_ref[...]
    z = res_ref[...].astype(jnp.float32) + y
    mu = jnp.mean(z, axis=-1, keepdims=True)
    var = jnp.mean((z - mu) ** 2, axis=-1, keepdims=True)
    inv = jax.lax.rsqrt(var + 1e-5)
    o_ref[...] = ((z - mu) * inv * g_ref[...] + beta_ref[...]).astype(o_ref.dtype)


def _ffn_add_ln_kernel(x_ref, w1_ref, b1_ref, w2_ref, b2_ref, g_ref, beta_ref, o_ref):
    # o = LayerNorm(x + (relu(x @ w1 + b1) @ w2 + b2)); bf16 MXU matmuls, f32 LN/residual.
    x = x_ref[...].astype(jnp.float32)
    h = jnp.dot(x.astype(jnp.bfloat16), w1_ref[...],
                preferred_element_type=jnp.float32) + b1_ref[...]
    h = jnp.maximum(h, 0.0)
    y = jnp.dot(h.astype(jnp.bfloat16), w2_ref[...],
                preferred_element_type=jnp.float32) + b2_ref[...]
    z = x + y
    mu = jnp.mean(z, axis=-1, keepdims=True)
    var = jnp.mean((z - mu) ** 2, axis=-1, keepdims=True)
    inv = jax.lax.rsqrt(var + 1e-5)
    o_ref[...] = ((z - mu) * inv * g_ref[...] + beta_ref[...]).astype(o_ref.dtype)


def _attention_kernel(qkv_ref, o_ref, *, num_heads, d_head):
    # qkv_ref: (S, 3D) bf16 for one batch element, columns = [q | k | v], q pre-scaled
    # (dh**-0.5 folded into wq/bq at weight-prep time).  Heads are extracted with STATIC
    # lane slices (no transposes, no relayouts) and written back into the lane-dense
    # (S, D) output block.  NOTE: heads are a sequential batch on the MXU regardless of
    # grouping, so the per-head loop costs no MXU utilisation.
    d = num_heads * d_head
    for h in range(num_heads):
        lo = h * d_head
        q = qkv_ref[:, lo:lo + d_head]                       # (S, dh) bf16
        k = qkv_ref[:, d + lo:d + lo + d_head]               # (S, dh) bf16
        v = qkv_ref[:, 2 * d + lo:2 * d + lo + d_head]       # (S, dh) bf16
        # contract the dh dims directly (q @ k^T form, no k transpose materialized)
        s = jax.lax.dot_general(q, k, (((1,), (1,)), ((), ())),
                                preferred_element_type=jnp.float32)      # (S, S) f32
        m = jnp.max(s, axis=-1, keepdims=True)                           # f32 stats
        p = jnp.exp(s - m)
        denom = jnp.sum(p, axis=-1, keepdims=True)
        p = p * pl.reciprocal(denom, approx=True)            # EUP slot: effectively free
        o = jax.lax.dot_general(p.astype(v.dtype), v, (((1,), (0,)), ((), ())),
                                preferred_element_type=jnp.float32)      # (S, dh) f32
        o_ref[:, lo:lo + d_head] = o.astype(o_ref.dtype)


# -------------------------------------- wrappers -----------------------------------------


def pallas_matmul_bias(x, w, b, out_dtype=None):
    n, din = x.shape
    dout = w.shape[1]
    tm = _row_tile(n)
    out_dtype = x.dtype if out_dtype is None else out_dtype
    return pl.pallas_call(
        _matmul_bias_kernel,
        out_shape=jax.ShapeDtypeStruct((n, dout), out_dtype),
        grid=(pl.cdiv(n, tm),),
        in_specs=[
            pl.BlockSpec((tm, din), lambda i: (i, 0)),
            _const_spec((din, dout)),
            _const_spec((1, dout)),
        ],
        out_specs=pl.BlockSpec((tm, dout), lambda i: (i, 0)),
        compiler_params=_compiler_params(1),
    )(x, w, b)


def pallas_proj_add_ln(x, res, w, b, g, beta):
    n, din = x.shape
    dout = w.shape[1]
    tm = _row_tile(n)
    return pl.pallas_call(
        _proj_add_ln_kernel,
        out_shape=jax.ShapeDtypeStruct((n, dout), res.dtype),
        grid=(pl.cdiv(n, tm),),
        in_specs=[
            pl.BlockSpec((tm, din), lambda i: (i, 0)),
            pl.BlockSpec((tm, dout), lambda i: (i, 0)),
            _const_spec((din, dout)),
            _const_spec((1, dout)),
            _const_spec((1, dout)),
            _const_spec((1, dout)),
        ],
        out_specs=pl.BlockSpec((tm, dout), lambda i: (i, 0)),
        compiler_params=_compiler_params(1),
    )(x, res, w, b, g, beta)


def pallas_ffn_add_ln(x, w1, b1, w2, b2, g, beta):
    n, d = x.shape
    dhid = w1.shape[1]
    tm = _row_tile(n)
    return pl.pallas_call(
        _ffn_add_ln_kernel,
        out_shape=jax.ShapeDtypeStruct((n, d), x.dtype),
        grid=(pl.cdiv(n, tm),),
        in_specs=[
            pl.BlockSpec((tm, d), lambda i: (i, 0)),
            _const_spec((d, dhid)),
            _const_spec((1, dhid)),
            _const_spec((dhid, d)),
            _const_spec((1, d)),
            _const_spec((1, d)),
            _const_spec((1, d)),
        ],
        out_specs=pl.BlockSpec((tm, d), lambda i: (i, 0)),
        compiler_params=_compiler_params(1),
    )(x, w1, b1, w2, b2, g, beta)


def pallas_attention(qkv, B, S, D, num_heads):
    # qkv: (B*S, 3D) bf16 with q pre-scaled.  One grid step per batch element: the block
    # DMA pulls the contiguous (S, 3D) slab straight from the projection output (no XLA
    # head transposes), and the kernel stores the merged-head output lane-dense as (S, D).
    dh = D // num_heads
    qkv = qkv.reshape(B, S, 3 * D)                     # free (contiguous) reshape
    kernel = functools.partial(_attention_kernel, num_heads=num_heads, d_head=dh)
    return pl.pallas_call(
        kernel,
        out_shape=jax.ShapeDtypeStruct((B, S, D), jnp.bfloat16),
        grid=(B,),
        in_specs=[pl.BlockSpec((None, S, 3 * D), lambda b: (b, 0, 0))],
        out_specs=pl.BlockSpec((None, S, D), lambda b: (b, 0, 0)),
        compiler_params=_compiler_params(1),
    )(qkv)


# --------------------------------- model / parameters ------------------------------------


def init_params(key, num_layers, d_model):
    def w_init(k, shape):
        return 0.02 * jax.random.normal(k, shape, jnp.float32)

    params = []
    for _ in range(num_layers):
        keys = jax.random.split(key, 7)
        key = keys[0]
        params.append(dict(
            wq=w_init(keys[1], (d_model, d_model)), bq=jnp.zeros((1, d_model), jnp.float32),
            wk=w_init(keys[2], (d_model, d_model)), bk=jnp.zeros((1, d_model), jnp.float32),
            wv=w_init(keys[3], (d_model, d_model)), bv=jnp.zeros((1, d_model), jnp.float32),
            wo=w_init(keys[4], (d_model, d_model)), bo=jnp.zeros((1, d_model), jnp.float32),
            ln1_g=jnp.ones((1, d_model), jnp.float32), ln1_b=jnp.zeros((1, d_model), jnp.float32),
            w1=w_init(keys[5], (d_model, d_model << 1)),
            b1=jnp.zeros((1, d_model << 1), jnp.float32),
            w2=w_init(keys[6], (d_model << 1, d_model)),
            b2=jnp.zeros((1, d_model), jnp.float32),
            ln2_g=jnp.ones((1, d_model), jnp.float32), ln2_b=jnp.zeros((1, d_model), jnp.float32),
        ))
    return params


def prepare_layer(p, num_heads):
    # One-time weight prep (outside the per-token path): fold the dh**-0.5 attention scale
    # into wq/bq, fuse the QKV projection, and cast matmul weights to bf16 (halves weight
    # DMA bytes, feeds the MXU's native bf16 path).  Biases / LN params stay f32.
    d_model = p["wq"].shape[0]
    scale = (d_model // num_heads) ** -0.5
    return dict(
        wqkv=jnp.concatenate([p["wq"] * scale, p["wk"], p["wv"]], axis=1).astype(jnp.bfloat16),
        bqkv=jnp.concatenate([p["bq"] * scale, p["bk"], p["bv"]], axis=1),
        wo=p["wo"].astype(jnp.bfloat16), bo=p["bo"],
        ln1_g=p["ln1_g"], ln1_b=p["ln1_b"],
        w1=p["w1"].astype(jnp.bfloat16), b1=p["b1"],
        w2=p["w2"].astype(jnp.bfloat16), b2=p["b2"],
        ln2_g=p["ln2_g"], ln2_b=p["ln2_b"],
    )


def prepare_params(params, num_heads):
    return [prepare_layer(p, num_heads) for p in params]


def encoder_layer_forward(x, p, num_heads):
    # x: (B, S, D) f32.  4 pallas_call launches; the only XLA ops in between are free
    # (contiguous) reshapes — no head split/merge transposes, no extra HBM round trips.
    B, S, D = x.shape
    tokens = x.reshape(B * S, D)

    # 1) fused QKV projection (bf16 MXU, f32 accumulate, bf16 output -> attention operand)
    qkv = pallas_matmul_bias(tokens, p["wqkv"], p["bqkv"], out_dtype=jnp.bfloat16)

    # 2) self attention: per-batch (S, 3D) slab in, lane-dense merged-head (S, D) out
    attn = pallas_attention(qkv, B, S, D, num_heads).reshape(B * S, D)

    # 3) out-projection + residual + LayerNorm (fused); dropout p=0.0 -> identity
    x1 = pallas_proj_add_ln(attn, tokens, p["wo"], p["bo"], p["ln1_g"], p["ln1_b"])

    # 4) FFN (relu) + residual + LayerNorm (fused)
    x2 = pallas_ffn_add_ln(x1, p["w1"], p["b1"], p["w2"], p["b2"], p["ln2_g"], p["ln2_b"])
    return x2.reshape(B, S, D)


def transformer_encoder_forward(x, prepared_params, num_heads, mask=None):
    # mask=None supported (matches the reference call).  See TODO(synk) at top.
    h = x
    for p in prepared_params:
        h = encoder_layer_forward(h, p, num_heads)
    return h


# ---------------------------------- pure-JAX reference -----------------------------------


def _reference_forward(x, params, num_heads):
    B, S, D = x.shape
    dh = D // num_heads

    def ln(y, g, b):
        mu = jnp.mean(y, axis=-1, keepdims=True)
        var = jnp.mean((y - mu) ** 2, axis=-1, keepdims=True)
        return (y - mu) * jax.lax.rsqrt(var + 1e-5) * g + b

    h = x
    for p in params:
        res = h
        q = (h @ p["wq"] + p["bq"]) * (dh ** -0.5)
        k = h @ p["wk"] + p["bk"]
        v = h @ p["wv"] + p["bv"]
        qh = q.reshape(B, S, num_heads, dh).transpose(0, 2, 1, 3)
        kh = k.reshape(B, S, num_heads, dh).transpose(0, 2, 1, 3)
        vh = v.reshape(B, S, num_heads, dh).transpose(0, 2, 1, 3)
        s = jnp.einsum("bhqd,bhkd->bhqk", qh, kh)
        w = jax.nn.softmax(s, axis=-1)
        a = jnp.einsum("bhqk,bhkd->bhqd", w, vh).transpose(0, 2, 1, 3).reshape(B, S, D)
        a = a @ p["wo"] + p["bo"]
        h = ln(res + a, p["ln1_g"], p["ln1_b"])
        f = jnp.maximum(h @ p["w1"] + p["b1"], 0.0) @ p["w2"] + p["b2"]
        h = ln(h + f, p["ln2_g"], p["ln2_b"])
    return h


# ------------------------------------------ main -----------------------------------------


if __name__ == "__main__":
    num_layers = 2
    d_model = 32
    num_heads = 4
    B, S = 2, 8

    key = jax.random.PRNGKey(0)
    k_x, k_p = jax.random.split(key)
    x = jax.random.normal(k_x, (B, S, d_model), jnp.float32)
    params = init_params(k_p, num_layers, d_model)
    prepped = prepare_params(params, num_heads)     # one-time weight fusion / bf16 cast

    fwd = jax.jit(functools.partial(transformer_encoder_forward, num_heads=num_heads))
    out = jax.block_until_ready(fwd(x, prepped))

    ref = _reference_forward(x, params, num_heads)
    assert out.shape == (B, S, d_model)
    # bf16 MXU matmuls (f32 accumulation, f32 LN/softmax stats/residuals) plus the EUP
    # approximate reciprocal in the softmax denominator -> compare to the f32 reference
    # at ~1e-2 (inference tolerance; see header notes).
    assert jnp.allclose(out, ref, atol=1e-2, rtol=1e-2), "mismatch vs reference"

    print("KERNEL_OK")
</pallas_src>

<mosaic_0001>
module attributes {stable_mosaic.version = 11 : i64} {
  func.func @_matmul_bias_kernel(%arg0: i32, %arg1: memref<16x32xf32, #tpu.memory_space<vmem>>, %arg2: memref<32x96xbf16, #tpu.memory_space<vmem>>, %arg3: memref<1x96xf32, #tpu.memory_space<vmem>>, %arg4: memref<16x96xbf16, #tpu.memory_space<vmem>>) attributes {dimension_semantics = [#tpu.dimension_semantics<parallel>], iteration_bounds = array<i64: 1>, scalar_prefetch = 0 : i64, scratch_operands = 0 : i64, tpu.core_type = #tpu.core_type<tc>, window_params = [{transform_indices = @transform_0, window_bounds = array<i64: 16, 32>}, {pipeline_mode = #tpu.pipeline_mode<synchronous>, transform_indices = @transform_1, window_bounds = array<i64: 32, 96>}, {pipeline_mode = #tpu.pipeline_mode<synchronous>, transform_indices = @transform_2, window_bounds = array<i64: 1, 96>}, {transform_indices = @transform_3, window_bounds = array<i64: 16, 96>}]} {
    %c0 = arith.constant 0 : index
    %c0_0 = arith.constant 0 : index
    %0 = vector.load %arg1[%c0, %c0_0] : memref<16x32xf32, #tpu.memory_space<vmem>>, vector<16x32xf32>
    %1 = arith.truncf %0 : vector<16x32xf32> to vector<16x32xbf16>
    %c0_1 = arith.constant 0 : index
    %c0_2 = arith.constant 0 : index
    %2 = vector.load %arg2[%c0_1, %c0_2] : memref<32x96xbf16, #tpu.memory_space<vmem>>, vector<32x96xbf16>
    %cst = arith.constant dense<0.000000e+00> : vector<16x96xf32>
    %3 = tpu.matmul %1, %2, %cst {dimension_numbers = #tpu.dot_dimension_numbers<[1], [0], [0], [1], [0, 0, 1, 1], [], []>} : vector<16x32xbf16>, vector<32x96xbf16>, vector<16x96xf32> -> vector<16x96xf32>
    %c0_3 = arith.constant 0 : index
    %c0_4 = arith.constant 0 : index
    %4 = vector.load %arg3[%c0_3, %c0_4] : memref<1x96xf32, #tpu.memory_space<vmem>>, vector<1x96xf32>
    %5 = vector.broadcast %4 : vector<1x96xf32> to vector<16x96xf32>
    %6 = arith.addf %3, %5 : vector<16x96xf32>
    %7 = arith.truncf %6 : vector<16x96xf32> to vector<16x96xbf16>
    %c0_5 = arith.constant 0 : index
    %c0_6 = arith.constant 0 : index
    %8 = vector.load %arg4[%c0_5, %c0_6] : memref<16x96xbf16, #tpu.memory_space<vmem>>, vector<16x96xbf16>
    tpu.vector_store %arg4[%c0_5, %c0_6], %7 {strides = array<i32>} : memref<16x96xbf16, #tpu.memory_space<vmem>>, vector<16x96xbf16>,
    return
  }
  func.func @transform_0(%arg0: i32) -> (i32, i32) {
    %c0_i32 = arith.constant 0 : i32
    %c0_i32_0 = arith.constant 0 : i32
    return %arg0, %c0_i32 : i32, i32
  }
  func.func @transform_1(%arg0: i32) -> (i32, i32) {
    %c0_i32 = arith.constant 0 : i32
    %c0_i32_0 = arith.constant 0 : i32
    %c0_i32_1 = arith.constant 0 : i32
    return %c0_i32, %c0_i32_0 : i32, i32
  }
  func.func @transform_2(%arg0: i32) -> (i32, i32) {
    %c0_i32 = arith.constant 0 : i32
    %c0_i32_0 = arith.constant 0 : i32
    %c0_i32_1 = arith.constant 0 : i32
    return %c0_i32, %c0_i32_0 : i32, i32
  }
  func.func @transform_3(%arg0: i32) -> (i32, i32) {
    %c0_i32 = arith.constant 0 : i32
    %c0_i32_0 = arith.constant 0 : i32
    return %arg0, %c0_i32 : i32, i32
  }
}

module attributes {stable_mosaic.version = 11 : i64} {
  func.func @_attention_kernel(%arg0: i32, %arg1: memref<1x8x96xbf16, #tpu.memory_space<vmem>>, %arg2: memref<1x8x32xbf16, #tpu.memory_space<vmem>>) attributes {dimension_semantics = [#tpu.dimension_semantics<parallel>], iteration_bounds = array<i64: 2>, scalar_prefetch = 0 : i64, scratch_operands = 0 : i64, tpu.core_type = #tpu.core_type<tc>, window_params = [{transform_indices = @transform_0, window_bounds = array<i64: 1, 8, 96>}, {transform_indices = @transform_1, window_bounds = array<i64: 1, 8, 32>}]} {
    %c0 = arith.constant 0 : index
    %c0_0 = arith.constant 0 : index
    %c0_1 = arith.constant 0 : index
    %0 = vector.load %arg1[%c0, %c0_0, %c0_1] : memref<1x8x96xbf16, #tpu.memory_space<vmem>>, vector<1x8x8xbf16>
    %1 = vector.shape_cast %0 : vector<1x8x8xbf16> to vector<8x8xbf16>
    %c0_2 = arith.constant 0 : index
    %c0_3 = arith.constant 0 : index
    %c32 = arith.constant 32 : index
    %2 = vector.load %arg1[%c0_2, %c0_3, %c32] : memref<1x8x96xbf16, #tpu.memory_space<vmem>>, vector<1x8x8xbf16>
    %3 = vector.shape_cast %2 : vector<1x8x8xbf16> to vector<8x8xbf16>
    %c0_4 = arith.constant 0 : index
    %c0_5 = arith.constant 0 : index
    %c64 = arith.constant 64 : index
    %4 = vector.load %arg1[%c0_4, %c0_5, %c64] : memref<1x8x96xbf16, #tpu.memory_space<vmem>>, vector<1x8x8xbf16>
    %5 = vector.shape_cast %4 : vector<1x8x8xbf16> to vector<8x8xbf16>
    %cst = arith.constant dense<0.000000e+00> : vector<8x8xf32>
    %6 = tpu.matmul %1, %3, %cst {dimension_numbers = #tpu.dot_dimension_numbers<[1], [1], [0], [0], [0, 0, 1, 0], [], []>} : vector<8x8xbf16>, vector<8x8xbf16>, vector<8x8xf32> -> vector<8x8xf32>
    %cst_6 = arith.constant dense<0xFF800000> : vector<8xf32>
    %7 = vector.multi_reduction <maximumf>, %6, %cst_6 [1] : vector<8x8xf32> to vector<8xf32>
    %8 = vector.shape_cast %7 : vector<8xf32> to vector<8x1xf32>
    %9 = vector.broadcast %8 : vector<8x1xf32> to vector<8x8xf32>
    %10 = arith.subf %6, %9 : vector<8x8xf32>
    %11 = math.exp %10 : vector<8x8xf32>
    %cst_7 = arith.constant dense<0.000000e+00> : vector<8xf32>
    %12 = vector.multi_reduction <add>, %11, %cst_7 [1] : vector<8x8xf32> to vector<8xf32>
    %13 = vector.shape_cast %12 : vector<8xf32> to vector<8x1xf32>
    %14 = tpu.reciprocal %13 {approx = true} : vector<8x1xf32> -> vector<8x1xf32>
    %15 = vector.broadcast %14 : vector<8x1xf32> to vector<8x8xf32>
    %16 = arith.mulf %11, %15 : vector<8x8xf32>
    %17 = arith.truncf %16 : vector<8x8xf32> to vector<8x8xbf16>
    %cst_8 = arith.constant dense<0.000000e+00> : vector<8x8xf32>
    %18 = tpu.matmul %17, %5, %cst_8 {dimension_numbers = #tpu.dot_dimension_numbers<[1], [0], [0], [1], [0, 0, 1, 1], [], []>} : vector<8x8xbf16>, vector<8x8xbf16>, vector<8x8xf32> -> vector<8x8xf32>
    %19 = arith.truncf %18 : vector<8x8xf32> to vector<8x8xbf16>
    %c0_9 = arith.constant 0 : index
    %c0_10 = arith.constant 0 : index
    %c0_11 = arith.constant 0 : index
    %20 = vector.load %arg2[%c0_9, %c0_10, %c0_11] : memref<1x8x32xbf16, #tpu.memory_space<vmem>>, vector<1x8x8xbf16>
    %21 = vector.shape_cast %20 : vector<1x8x8xbf16> to vector<8x8xbf16>
    %22 = vector.shape_cast %19 : vector<8x8xbf16> to vector<1x8x8xbf16>
    tpu.vector_store %arg2[%c0_9, %c0_10, %c0_11], %22 {strides = array<i32>} : memref<1x8x32xbf16, #tpu.memory_space<vmem>>, vector<1x8x8xbf16>,
    %c0_12 = arith.constant 0 : index
    %c0_13 = arith.constant 0 : index
    %c8 = arith.constant 8 : index
    %23 = vector.load %arg1[%c0_12, %c0_13, %c8] : memref<1x8x96xbf16, #tpu.memory_space<vmem>>, vector<1x8x8xbf16>
    %24 = vector.shape_cast %23 : vector<1x8x8xbf16> to vector<8x8xbf16>
    %c0_14 = arith.constant 0 : index
    %c0_15 = arith.constant 0 : index
    %c40 = arith.constant 40 : index
    %25 = vector.load %arg1[%c0_14, %c0_15, %c40] : memref<1x8x96xbf16, #tpu.memory_space<vmem>>, vector<1x8x8xbf16>
    %26 = vector.shape_cast %25 : vector<1x8x8xbf16> to vector<8x8xbf16>
    %c0_16 = arith.constant 0 : index
    %c0_17 = arith.constant 0 : index
    %c72 = arith.constant 72 : index
    %27 = vector.load %arg1[%c0_16, %c0_17, %c72] : memref<1x8x96xbf16, #tpu.memory_space<vmem>>, vector<1x8x8xbf16>
    %28 = vector.shape_cast %27 : vector<1x8x8xbf16> to vector<8x8xbf16>
    %cst_18 = arith.constant dense<0.000000e+00> : vector<8x8xf32>
    %29 = tpu.matmul %24, %26, %cst_18 {dimension_numbers = #tpu.dot_dimension_numbers<[1], [1], [0], [0], [0, 0, 1, 0], [], []>} : vector<8x8xbf16>, vector<8x8xbf16>, vector<8x8xf32> -> vector<8x8xf32>
    %cst_19 = arith.constant dense<0xFF800000> : vector<8xf32>
    %30 = vector.multi_reduction <maximumf>, %29, %cst_19 [1] : vector<8x8xf32> to vector<8xf32>
    %31 = vector.shape_cast %30 : vector<8xf32> to vector<8x1xf32>
    %32 = vector.broadcast %31 : vector<8x1xf32> to vector<8x8xf32>
    %33 = arith.subf %29, %32 : vector<8x8xf32>
    %34 = math.exp %33 : vector<8x8xf32>
    %cst_20 = arith.constant dense<0.000000e+00> : vector<8xf32>
    %35 = vector.multi_reduction <add>, %34, %cst_20 [1] : vector<8x8xf32> to vector<8xf32>
    %36 = vector.shape_cast %35 : vector<8xf32> to vector<8x1xf32>
    %37 = tpu.reciprocal %36 {approx = true} : vector<8x1xf32> -> vector<8x1xf32>
    %38 = vector.broadcast %37 : vector<8x1xf32> to vector<8x8xf32>
    %39 = arith.mulf %34, %38 : vector<8x8xf32>
    %40 = arith.truncf %39 : vector<8x8xf32> to vector<8x8xbf16>
    %cst_21 = arith.constant dense<0.000000e+00> : vector<8x8xf32>
    %41 = tpu.matmul %40, %28, %cst_21 {dimension_numbers = #tpu.dot_dimension_numbers<[1], [0], [0], [1], [0, 0, 1, 1], [], []>} : vector<8x8xbf16>, vector<8x8xbf16>, vector<8x8xf32> -> vector<8x8xf32>
    %42 = arith.truncf %41 : vector<8x8xf32> to vector<8x8xbf16>
    %c0_22 = arith.constant 0 : index
    %c0_23 = arith.constant 0 : index
    %c8_24 = arith.constant 8 : index
    %43 = vector.load %arg2[%c0_22, %c0_23, %c8_24] : memref<1x8x32xbf16, #tpu.memory_space<vmem>>, vector<1x8x8xbf16>
    %44 = vector.shape_cast %43 : vector<1x8x8xbf16> to vector<8x8xbf16>
    %45 = vector.shape_cast %42 : vector<8x8xbf16> to vector<1x8x8xbf16>
    tpu.vector_store %arg2[%c0_22, %c0_23, %c8_24], %45 {strides = array<i32>} : memref<1x8x32xbf16, #tpu.memory_space<vmem>>, vector<1x8x8xbf16>,
    %c0_25 = arith.constant 0 : index
    %c0_26 = arith.constant 0 : index
    %c16 = arith.constant 16 : index
    %46 = vector.load %arg1[%c0_25, %c0_26, %c16] : memref<1x8x96xbf16, #tpu.memory_space<vmem>>, vector<1x8x8xbf16>
    %47 = vector.shape_cast %46 : vector<1x8x8xbf16> to vector<8x8xbf16>
    %c0_27 = arith.constant 0 : index
    %c0_28 = arith.constant 0 : index
    %c48 = arith.constant 48 : index
    %48 = vector.load %arg1[%c0_27, %c0_28, %c48] : memref<1x8x96xbf16, #tpu.memory_space<vmem>>, vector<1x8x8xbf16>
    %49 = vector.shape_cast %48 : vector<1x8x8xbf16> to vector<8x8xbf16>
    %c0_29 = arith.constant 0 : index
    %c0_30 = arith.constant 0 : index
    %c80 = arith.constant 80 : index
    %50 = vector.load %arg1[%c0_29, %c0_30, %c80] : memref<1x8x96xbf16, #tpu.memory_space<vmem>>, vector<1x8x8xbf16>
    %51 = vector.shape_cast %50 : vector<1x8x8xbf16> to vector<8x8xbf16>
    %cst_31 = arith.constant dense<0.000000e+00> : vector<8x8xf32>
    %52 = tpu.matmul %47, %49, %cst_31 {dimension_numbers = #tpu.dot_dimension_numbers<[1], [1], [0], [0], [0, 0, 1, 0], [], []>} : vector<8x8xbf16>, vector<8x8xbf16>, vector<8x8xf32> -> vector<8x8xf32>
    %cst_32 = arith.constant dense<0xFF800000> : vector<8xf32>
    %53 = vector.multi_reduction <maximumf>, %52, %cst_32 [1] : vector<8x8xf32> to vector<8xf32>
    %54 = vector.shape_cast %53 : vector<8xf32> to vector<8x1xf32>
    %55 = vector.broadcast %54 : vector<8x1xf32> to vector<8x8xf32>
    %56 = arith.subf %52, %55 : vector<8x8xf32>
    %57 = math.exp %56 : vector<8x8xf32>
    %cst_33 = arith.constant dense<0.000000e+00> : vector<8xf32>
    %58 = vector.multi_reduction <add>, %57, %cst_33 [1] : vector<8x8xf32> to vector<8xf32>
    %59 = vector.shape_cast %58 : vector<8xf32> to vector<8x1xf32>
    %60 = tpu.reciprocal %59 {approx = true} : vector<8x1xf32> -> vector<8x1xf32>
    %61 = vector.broadcast %60 : vector<8x1xf32> to vector<8x8xf32>
    %62 = arith.mulf %57, %61 : vector<8x8xf32>
    %63 = arith.truncf %62 : vector<8x8xf32> to vector<8x8xbf16>
    %cst_34 = arith.constant dense<0.000000e+00> : vector<8x8xf32>
    %64 = tpu.matmul %63, %51, %cst_34 {dimension_numbers = #tpu.dot_dimension_numbers<[1], [0], [0], [1], [0, 0, 1, 1], [], []>} : vector<8x8xbf16>, vector<8x8xbf16>, vector<8x8xf32> -> vector<8x8xf32>
    %65 = arith.truncf %64 : vector<8x8xf32> to vector<8x8xbf16>
    %c0_35 = arith.constant 0 : index
    %c0_36 = arith.constant 0 : index
    %c16_37 = arith.constant 16 : index
    %66 = vector.load %arg2[%c0_35, %c0_36, %c16_37] : memref<1x8x32xbf16, #tpu.memory_space<vmem>>, vector<1x8x8xbf16>
    %67 = vector.shape_cast %66 : vector<1x8x8xbf16> to vector<8x8xbf16>
    %68 = vector.shape_cast %65 : vector<8x8xbf16> to vector<1x8x8xbf16>
    tpu.vector_store %arg2[%c0_35, %c0_36, %c16_37], %68 {strides = array<i32>} : memref<1x8x32xbf16, #tpu.memory_space<vmem>>, vector<1x8x8xbf16>,
    %c0_38 = arith.constant 0 : index
    %c0_39 = arith.constant 0 : index
    %c24 = arith.constant 24 : index
    %69 = vector.load %arg1[%c0_38, %c0_39, %c24] : memref<1x8x96xbf16, #tpu.memory_space<vmem>>, vector<1x8x8xbf16>
    %70 = vector.shape_cast %69 : vector<1x8x8xbf16> to vector<8x8xbf16>
    %c0_40 = arith.constant 0 : index
    %c0_41 = arith.constant 0 : index
    %c56 = arith.constant 56 : index
    %71 = vector.load %arg1[%c0_40, %c0_41, %c56] : memref<1x8x96xbf16, #tpu.memory_space<vmem>>, vector<1x8x8xbf16>
    %72 = vector.shape_cast %71 : vector<1x8x8xbf16> to vector<8x8xbf16>
    %c0_42 = arith.constant 0 : index
    %c0_43 = arith.constant 0 : index
    %c88 = arith.constant 88 : index
    %73 = vector.load %arg1[%c0_42, %c0_43, %c88] : memref<1x8x96xbf16, #tpu.memory_space<vmem>>, vector<1x8x8xbf16>
    %74 = vector.shape_cast %73 : vector<1x8x8xbf16> to vector<8x8xbf16>
    %cst_44 = arith.constant dense<0.000000e+00> : vector<8x8xf32>
    %75 = tpu.matmul %70, %72, %cst_44 {dimension_numbers = #tpu.dot_dimension_numbers<[1], [1], [0], [0], [0, 0, 1, 0], [], []>} : vector<8x8xbf16>, vector<8x8xbf16>, vector<8x8xf32> -> vector<8x8xf32>
    %cst_45 = arith.constant dense<0xFF800000> : vector<8xf32>
    %76 = vector.multi_reduction <maximumf>, %75, %cst_45 [1] : vector<8x8xf32> to vector<8xf32>
    %77 = vector.shape_cast %76 : vector<8xf32> to vector<8x1xf32>
    %78 = vector.broadcast %77 : vector<8x1xf32> to vector<8x8xf32>
    %79 = arith.subf %75, %78 : vector<8x8xf32>
    %80 = math.exp %79 : vector<8x8xf32>
    %cst_46 = arith.constant dense<0.000000e+00> : vector<8xf32>
    %81 = vector.multi_reduction <add>, %80, %cst_46 [1] : vector<8x8xf32> to vector<8xf32>
    %82 = vector.shape_cast %81 : vector<8xf32> to vector<8x1xf32>
    %83 = tpu.reciprocal %82 {approx = true} : vector<8x1xf32> -> vector<8x1xf32>
    %84 = vector.broadcast %83 : vector<8x1xf32> to vector<8x8xf32>
    %85 = arith.mulf %80, %84 : vector<8x8xf32>
    %86 = arith.truncf %85 : vector<8x8xf32> to vector<8x8xbf16>
    %cst_47 = arith.constant dense<0.000000e+00> : vector<8x8xf32>
    %87 = tpu.matmul %86, %74, %cst_47 {dimension_numbers = #tpu.dot_dimension_numbers<[1], [0], [0], [1], [0, 0, 1, 1], [], []>} : vector<8x8xbf16>, vector<8x8xbf16>, vector<8x8xf32> -> vector<8x8xf32>
    %88 = arith.truncf %87 : vector<8x8xf32> to vector<8x8xbf16>
    %c0_48 = arith.constant 0 : index
    %c0_49 = arith.constant 0 : index
    %c24_50 = arith.constant 24 : index
    %89 = vector.load %arg2[%c0_48, %c0_49, %c24_50] : memref<1x8x32xbf16, #tpu.memory_space<vmem>>, vector<1x8x8xbf16>
    %90 = vector.shape_cast %89 : vector<1x8x8xbf16> to vector<8x8xbf16>
    %91 = vector.shape_cast %88 : vector<8x8xbf16> to vector<1x8x8xbf16>
    tpu.vector_store %arg2[%c0_48, %c0_49, %c24_50], %91 {strides = array<i32>} : memref<1x8x32xbf16, #tpu.memory_space<vmem>>, vector<1x8x8xbf16>,
    return
  }
  func.func @transform_0(%arg0: i32) -> (i32, i32, i32) {
    %c0_i32 = arith.constant 0 : i32
    %c0_i32_0 = arith.constant 0 : i32
    %c0_i32_1 = arith.constant 0 : i32
    return %arg0, %c0_i32, %c0_i32_0 : i32, i32, i32
  }
  func.func @transform_1(%arg0: i32) -> (i32, i32, i32) {
    %c0_i32 = arith.constant 0 : i32
    %c0_i32_0 = arith.constant 0 : i32
    %c0_i32_1 = arith.constant 0 : i32
    return %arg0, %c0_i32, %c0_i32_0 : i32, i32, i32
  }
}

module attributes {stable_mosaic.version = 11 : i64} {
  func.func @_proj_add_ln_kernel(%arg0: i32, %arg1: memref<16x32xbf16, #tpu.memory_space<vmem>>, %arg2: memref<16x32xf32, #tpu.memory_space<vmem>>, %arg3: memref<32x32xbf16, #tpu.memory_space<vmem>>, %arg4: memref<1x32xf32, #tpu.memory_space<vmem>>, %arg5: memref<1x32xf32, #tpu.memory_space<vmem>>, %arg6: memref<1x32xf32, #tpu.memory_space<vmem>>, %arg7: memref<16x32xf32, #tpu.memory_space<vmem>>) attributes {dimension_semantics = [#tpu.dimension_semantics<parallel>], iteration_bounds = array<i64: 1>, scalar_prefetch = 0 : i64, scratch_operands = 0 : i64, tpu.core_type = #tpu.core_type<tc>, window_params = [{transform_indices = @transform_0, window_bounds = array<i64: 16, 32>}, {transform_indices = @transform_1, window_bounds = array<i64: 16, 32>}, {pipeline_mode = #tpu.pipeline_mode<synchronous>, transform_indices = @transform_2, window_bounds = array<i64: 32, 32>}, {pipeline_mode = #tpu.pipeline_mode<synchronous>, transform_indices = @transform_3, window_bounds = array<i64: 1, 32>}, {pipeline_mode = #tpu.pipeline_mode<synchronous>, transform_indices = @transform_4, window_bounds = array<i64: 1, 32>}, {pipeline_mode = #tpu.pipeline_mode<synchronous>, transform_indices = @transform_5, window_bounds = array<i64: 1, 32>}, {transform_indices = @transform_6, window_bounds = array<i64: 16, 32>}]} {
    %c0 = arith.constant 0 : index
    %c0_0 = arith.constant 0 : index
    %0 = vector.load %arg1[%c0, %c0_0] : memref<16x32xbf16, #tpu.memory_space<vmem>>, vector<16x32xbf16>
    %c0_1 = arith.constant 0 : index
    %c0_2 = arith.constant 0 : index
    %1 = vector.load %arg3[%c0_1, %c0_2] : memref<32x32xbf16, #tpu.memory_space<vmem>>, vector<32x32xbf16>
    %cst = arith.constant dense<0.000000e+00> : vector<16x32xf32>
    %2 = tpu.matmul %0, %1, %cst {dimension_numbers = #tpu.dot_dimension_numbers<[1], [0], [0], [1], [0, 0, 1, 1], [], []>} : vector<16x32xbf16>, vector<32x32xbf16>, vector<16x32xf32> -> vector<16x32xf32>
    %c0_3 = arith.constant 0 : index
    %c0_4 = arith.constant 0 : index
    %3 = vector.load %arg4[%c0_3, %c0_4] : memref<1x32xf32, #tpu.memory_space<vmem>>, vector<1x32xf32>
    %4 = vector.broadcast %3 : vector<1x32xf32> to vector<16x32xf32>
    %5 = arith.addf %2, %4 : vector<16x32xf32>
    %c0_5 = arith.constant 0 : index
    %c0_6 = arith.constant 0 : index
    %6 = vector.load %arg2[%c0_5, %c0_6] : memref<16x32xf32, #tpu.memory_space<vmem>>, vector<16x32xf32>
    %7 = arith.addf %6, %5 : vector<16x32xf32>
    %cst_7 = arith.constant dense<0.000000e+00> : vector<16xf32>
    %8 = vector.multi_reduction <add>, %7, %cst_7 [1] : vector<16x32xf32> to vector<16xf32>
    %9 = vector.shape_cast %8 : vector<16xf32> to vector<16x1xf32>
    %cst_8 = arith.constant 3.200000e+01 : f32
    %10 = vector.broadcast %cst_8 : f32 to vector<16x1xf32>
    %11 = arith.divf %9, %10 : vector<16x1xf32>
    %12 = vector.broadcast %11 : vector<16x1xf32> to vector<16x32xf32>
    %13 = arith.subf %7, %12 : vector<16x32xf32>
    %14 = arith.mulf %13, %13 : vector<16x32xf32>
    %cst_9 = arith.constant dense<0.000000e+00> : vector<16xf32>
    %15 = vector.multi_reduction <add>, %14, %cst_9 [1] : vector<16x32xf32> to vector<16xf32>
    %16 = vector.shape_cast %15 : vector<16xf32> to vector<16x1xf32>
    %cst_10 = arith.constant 3.200000e+01 : f32
    %17 = vector.broadcast %cst_10 : f32 to vector<16x1xf32>
    %18 = arith.divf %16, %17 : vector<16x1xf32>
    %cst_11 = arith.constant 9.99999974E-6 : f32
    %19 = vector.broadcast %cst_11 : f32 to vector<16x1xf32>
    %20 = arith.addf %18, %19 : vector<16x1xf32>
    %21 = math.rsqrt %20 : vector<16x1xf32>
    %22 = vector.broadcast %11 : vector<16x1xf32> to vector<16x32xf32>
    %23 = arith.subf %7, %22 : vector<16x32xf32>
    %24 = vector.broadcast %21 : vector<16x1xf32> to vector<16x32xf32>
    %25 = arith.mulf %23, %24 : vector<16x32xf32>
    %c0_12 = arith.constant 0 : index
    %c0_13 = arith.constant 0 : index
    %26 = vector.load %arg5[%c0_12, %c0_13] : memref<1x32xf32, #tpu.memory_space<vmem>>, vector<1x32xf32>
    %27 = vector.broadcast %26 : vector<1x32xf32> to vector<16x32xf32>
    %28 = arith.mulf %25, %27 : vector<16x32xf32>
    %c0_14 = arith.constant 0 : index
    %c0_15 = arith.constant 0 : index
    %29 = vector.load %arg6[%c0_14, %c0_15] : memref<1x32xf32, #tpu.memory_space<vmem>>, vector<1x32xf32>
    %30 = vector.broadcast %29 : vector<1x32xf32> to vector<16x32xf32>
    %31 = arith.addf %28, %30 : vector<16x32xf32>
    %c0_16 = arith.constant 0 : index
    %c0_17 = arith.constant 0 : index
    %32 = vector.load %arg7[%c0_16, %c0_17] : memref<16x32xf32, #tpu.memory_space<vmem>>, vector<16x32xf32>
    tpu.vector_store %arg7[%c0_16, %c0_17], %31 {strides = array<i32>} : memref<16x32xf32, #tpu.memory_space<vmem>>, vector<16x32xf32>,
    return
  }
  func.func @transform_0(%arg0: i32) -> (i32, i32) {
    %c0_i32 = arith.constant 0 : i32
    %c0_i32_0 = arith.constant 0 : i32
    return %arg0, %c0_i32 : i32, i32
  }
  func.func @transform_1(%arg0: i32) -> (i32, i32) {
    %c0_i32 = arith.constant 0 : i32
    %c0_i32_0 = arith.constant 0 : i32
    return %arg0, %c0_i32 : i32, i32
  }
  func.func @transform_2(%arg0: i32) -> (i32, i32) {
    %c0_i32 = arith.constant 0 : i32
    %c0_i32_0 = arith.constant 0 : i32
    %c0_i32_1 = arith.constant 0 : i32
    return %c0_i32, %c0_i32_0 : i32, i32
  }
  func.func @transform_3(%arg0: i32) -> (i32, i32) {
    %c0_i32 = arith.constant 0 : i32
    %c0_i32_0 = arith.constant 0 : i32
    %c0_i32_1 = arith.constant 0 : i32
    return %c0_i32, %c0_i32_0 : i32, i32
  }
  func.func @transform_4(%arg0: i32) -> (i32, i32) {
    %c0_i32 = arith.constant 0 : i32
    %c0_i32_0 = arith.constant 0 : i32
    %c0_i32_1 = arith.constant 0 : i32
    return %c0_i32, %c0_i32_0 : i32, i32
  }
  func.func @transform_5(%arg0: i32) -> (i32, i32) {
    %c0_i32 = arith.constant 0 : i32
    %c0_i32_0 = arith.constant 0 : i32
    %c0_i32_1 = arith.constant 0 : i32
    return %c0_i32, %c0_i32_0 : i32, i32
  }
  func.func @transform_6(%arg0: i32) -> (i32, i32) {
    %c0_i32 = arith.constant 0 : i32
    %c0_i32_0 = arith.constant 0 : i32
    return %arg0, %c0_i32 : i32, i32
  }
}

module attributes {stable_mosaic.version = 11 : i64} {
  func.func @_ffn_add_ln_kernel(%arg0: i32, %arg1: memref<16x32xf32, #tpu.memory_space<vmem>>, %arg2: memref<32x64xbf16, #tpu.memory_space<vmem>>, %arg3: memref<1x64xf32, #tpu.memory_space<vmem>>, %arg4: memref<64x32xbf16, #tpu.memory_space<vmem>>, %arg5: memref<1x32xf32, #tpu.memory_space<vmem>>, %arg6: memref<1x32xf32, #tpu.memory_space<vmem>>, %arg7: memref<1x32xf32, #tpu.memory_space<vmem>>, %arg8: memref<16x32xf32, #tpu.memory_space<vmem>>) attributes {dimension_semantics = [#tpu.dimension_semantics<parallel>], iteration_bounds = array<i64: 1>, scalar_prefetch = 0 : i64, scratch_operands = 0 : i64, tpu.core_type = #tpu.core_type<tc>, window_params = [{transform_indices = @transform_0, window_bounds = array<i64: 16, 32>}, {pipeline_mode = #tpu.pipeline_mode<synchronous>, transform_indices = @transform_1, window_bounds = array<i64: 32, 64>}, {pipeline_mode = #tpu.pipeline_mode<synchronous>, transform_indices = @transform_2, window_bounds = array<i64: 1, 64>}, {pipeline_mode = #tpu.pipeline_mode<synchronous>, transform_indices = @transform_3, window_bounds = array<i64: 64, 32>}, {pipeline_mode = #tpu.pipeline_mode<synchronous>, transform_indices = @transform_4, window_bounds = array<i64: 1, 32>}, {pipeline_mode = #tpu.pipeline_mode<synchronous>, transform_indices = @transform_5, window_bounds = array<i64: 1, 32>}, {pipeline_mode = #tpu.pipeline_mode<synchronous>, transform_indices = @transform_6, window_bounds = array<i64: 1, 32>}, {transform_indices = @transform_7, window_bounds = array<i64: 16, 32>}]} {
    %c0 = arith.constant 0 : index
    %c0_0 = arith.constant 0 : index
    %0 = vector.load %arg1[%c0, %c0_0] : memref<16x32xf32, #tpu.memory_space<vmem>>, vector<16x32xf32>
    %1 = arith.truncf %0 : vector<16x32xf32> to vector<16x32xbf16>
    %c0_1 = arith.constant 0 : index
    %c0_2 = arith.constant 0 : index
    %2 = vector.load %arg2[%c0_1, %c0_2] : memref<32x64xbf16, #tpu.memory_space<vmem>>, vector<32x64xbf16>
    %cst = arith.constant dense<0.000000e+00> : vector<16x64xf32>
    %3 = tpu.matmul %1, %2, %cst {dimension_numbers = #tpu.dot_dimension_numbers<[1], [0], [0], [1], [0, 0, 1, 1], [], []>} : vector<16x32xbf16>, vector<32x64xbf16>, vector<16x64xf32> -> vector<16x64xf32>
    %c0_3 = arith.constant 0 : index
    %c0_4 = arith.constant 0 : index
    %4 = vector.load %arg3[%c0_3, %c0_4] : memref<1x64xf32, #tpu.memory_space<vmem>>, vector<1x64xf32>
    %5 = vector.broadcast %4 : vector<1x64xf32> to vector<16x64xf32>
    %6 = arith.addf %3, %5 : vector<16x64xf32>
    %cst_5 = arith.constant 0.000000e+00 : f32
    %7 = vector.broadcast %cst_5 : f32 to vector<16x64xf32>
    %8 = arith.maximumf %6, %7 : vector<16x64xf32>
    %9 = arith.truncf %8 : vector<16x64xf32> to vector<16x64xbf16>
    %c0_6 = arith.constant 0 : index
    %c0_7 = arith.constant 0 : index
    %10 = vector.load %arg4[%c0_6, %c0_7] : memref<64x32xbf16, #tpu.memory_space<vmem>>, vector<64x32xbf16>
    %cst_8 = arith.constant dense<0.000000e+00> : vector<16x32xf32>
    %11 = tpu.matmul %9, %10, %cst_8 {dimension_numbers = #tpu.dot_dimension_numbers<[1], [0], [0], [1], [0, 0, 1, 1], [], []>} : vector<16x64xbf16>, vector<64x32xbf16>, vector<16x32xf32> -> vector<16x32xf32>
    %c0_9 = arith.constant 0 : index
    %c0_10 = arith.constant 0 : index
    %12 = vector.load %arg5[%c0_9, %c0_10] : memref<1x32xf32, #tpu.memory_space<vmem>>, vector<1x32xf32>
    %13 = vector.broadcast %12 : vector<1x32xf32> to vector<16x32xf32>
    %14 = arith.addf %11, %13 : vector<16x32xf32>
    %15 = arith.addf %0, %14 : vector<16x32xf32>
    %cst_11 = arith.constant dense<0.000000e+00> : vector<16xf32>
    %16 = vector.multi_reduction <add>, %15, %cst_11 [1] : vector<16x32xf32> to vector<16xf32>
    %17 = vector.shape_cast %16 : vector<16xf32> to vector<16x1xf32>
    %cst_12 = arith.constant 3.200000e+01 : f32
    %18 = vector.broadcast %cst_12 : f32 to vector<16x1xf32>
    %19 = arith.divf %17, %18 : vector<16x1xf32>
    %20 = vector.broadcast %19 : vector<16x1xf32> to vector<16x32xf32>
    %21 = arith.subf %15, %20 : vector<16x32xf32>
    %22 = arith.mulf %21, %21 : vector<16x32xf32>
    %cst_13 = arith.constant dense<0.000000e+00> : vector<16xf32>
    %23 = vector.multi_reduction <add>, %22, %cst_13 [1] : vector<16x32xf32> to vector<16xf32>
    %24 = vector.shape_cast %23 : vector<16xf32> to vector<16x1xf32>
    %cst_14 = arith.constant 3.200000e+01 : f32
    %25 = vector.broadcast %cst_14 : f32 to vector<16x1xf32>
    %26 = arith.divf %24, %25 : vector<16x1xf32>
    %cst_15 = arith.constant 9.99999974E-6 : f32
    %27 = vector.broadcast %cst_15 : f32 to vector<16x1xf32>
    %28 = arith.addf %26, %27 : vector<16x1xf32>
    %29 = math.rsqrt %28 : vector<16x1xf32>
    %30 = vector.broadcast %19 : vector<16x1xf32> to vector<16x32xf32>
    %31 = arith.subf %15, %30 : vector<16x32xf32>
    %32 = vector.broadcast %29 : vector<16x1xf32> to vector<16x32xf32>
    %33 = arith.mulf %31, %32 : vector<16x32xf32>
    %c0_16 = arith.constant 0 : index
    %c0_17 = arith.constant 0 : index
    %34 = vector.load %arg6[%c0_16, %c0_17] : memref<1x32xf32, #tpu.memory_space<vmem>>, vector<1x32xf32>
    %35 = vector.broadcast %34 : vector<1x32xf32> to vector<16x32xf32>
    %36 = arith.mulf %33, %35 : vector<16x32xf32>
    %c0_18 = arith.constant 0 : index
    %c0_19 = arith.constant 0 : index
    %37 = vector.load %arg7[%c0_18, %c0_19] : memref<1x32xf32, #tpu.memory_space<vmem>>, vector<1x32xf32>
    %38 = vector.broadcast %37 : vector<1x32xf32> to vector<16x32xf32>
    %39 = arith.addf %36, %38 : vector<16x32xf32>
    %c0_20 = arith.constant 0 : index
    %c0_21 = arith.constant 0 : index
    %40 = vector.load %arg8[%c0_20, %c0_21] : memref<16x32xf32, #tpu.memory_space<vmem>>, vector<16x32xf32>
    tpu.vector_store %arg8[%c0_20, %c0_21], %39 {strides = array<i32>} : memref<16x32xf32, #tpu.memory_space<vmem>>, vector<16x32xf32>,
    return
  }
  func.func @transform_0(%arg0: i32) -> (i32, i32) {
    %c0_i32 = arith.constant 0 : i32
    %c0_i32_0 = arith.constant 0 : i32
    return %arg0, %c0_i32 : i32, i32
  }
  func.func @transform_1(%arg0: i32) -> (i32, i32) {
    %c0_i32 = arith.constant 0 : i32
    %c0_i32_0 = arith.constant 0 : i32
    %c0_i32_1 = arith.constant 0 : i32
    return %c0_i32, %c0_i32_0 : i32, i32
  }
  func.func @transform_2(%arg0: i32) -> (i32, i32) {
    %c0_i32 = arith.constant 0 : i32
    %c0_i32_0 = arith.constant 0 : i32
    %c0_i32_1 = arith.constant 0 : i32
    return %c0_i32, %c0_i32_0 : i32, i32
  }
  func.func @transform_3(%arg0: i32) -> (i32, i32) {
    %c0_i32 = arith.constant 0 : i32
    %c0_i32_0 = arith.constant 0 : i32
    %c0_i32_1 = arith.constant 0 : i32
    return %c0_i32, %c0_i32_0 : i32, i32
  }
  func.func @transform_4(%arg0: i32) -> (i32, i32) {
    %c0_i32 = arith.constant 0 : i32
    %c0_i32_0 = arith.constant 0 : i32
    %c0_i32_1 = arith.constant 0 : i32
    return %c0_i32, %c0_i32_0 : i32, i32
  }
  func.func @transform_5(%arg0: i32) -> (i32, i32) {
    %c0_i32 = arith.constant 0 : i32
    %c0_i32_0 = arith.constant 0 : i32
    %c0_i32_1 = arith.constant 0 : i32
    return %c0_i32, %c0_i32_0 : i32, i32
  }
  func.func @transform_6(%arg0: i32) -> (i32, i32) {
    %c0_i32 = arith.constant 0 : i32
    %c0_i32_0 = arith.constant 0 : i32
    %c0_i32_1 = arith.constant 0 : i32
    return %c0_i32, %c0_i32_0 : i32, i32
  }
  func.func @transform_7(%arg0: i32) -> (i32, i32) {
    %c0_i32 = arith.constant 0 : i32
    %c0_i32_0 = arith.constant 0 : i32
    return %arg0, %c0_i32 : i32, i32
  }
}

module attributes {stable_mosaic.version = 11 : i64} {
  func.func @_matmul_bias_kernel(%arg0: i32, %arg1: memref<16x32xf32, #tpu.memory_space<vmem>>, %arg2: memref<32x96xbf16, #tpu.memory_space<vmem>>, %arg3: memref<1x96xf32, #tpu.memory_space<vmem>>, %arg4: memref<16x96xbf16, #tpu.memory_space<vmem>>) attributes {dimension_semantics = [#tpu.dimension_semantics<parallel>], iteration_bounds = array<i64: 1>, scalar_prefetch = 0 : i64, scratch_operands = 0 : i64, tpu.core_type = #tpu.core_type<tc>, window_params = [{transform_indices = @transform_0, window_bounds = array<i64: 16, 32>}, {pipeline_mode = #tpu.pipeline_mode<synchronous>, transform_indices = @transform_1, window_bounds = array<i64: 32, 96>}, {pipeline_mode = #tpu.pipeline_mode<synchronous>, transform_indices = @transform_2, window_bounds = array<i64: 1, 96>}, {transform_indices = @transform_3, window_bounds = array<i64: 16, 96>}]} {
    %c0 = arith.constant 0 : index
    %c0_0 = arith.constant 0 : index
    %0 = vector.load %arg1[%c0, %c0_0] : memref<16x32xf32, #tpu.memory_space<vmem>>, vector<16x32xf32>
    %1 = arith.truncf %0 : vector<16x32xf32> to vector<16x32xbf16>
    %c0_1 = arith.constant 0 : index
    %c0_2 = arith.constant 0 : index
    %2 = vector.load %arg2[%c0_1, %c0_2] : memref<32x96xbf16, #tpu.memory_space<vmem>>, vector<32x96xbf16>
    %cst = arith.constant dense<0.000000e+00> : vector<16x96xf32>
    %3 = tpu.matmul %1, %2, %cst {dimension_numbers = #tpu.dot_dimension_numbers<[1], [0], [0], [1], [0, 0, 1, 1], [], []>} : vector<16x32xbf16>, vector<32x96xbf16>, vector<16x96xf32> -> vector<16x96xf32>
    %c0_3 = arith.constant 0 : index
    %c0_4 = arith.constant 0 : index
    %4 = vector.load %arg3[%c0_3, %c0_4] : memref<1x96xf32, #tpu.memory_space<vmem>>, vector<1x96xf32>
    %5 = vector.broadcast %4 : vector<1x96xf32> to vector<16x96xf32>
    %6 = arith.addf %3, %5 : vector<16x96xf32>
    %7 = arith.truncf %6 : vector<16x96xf32> to vector<16x96xbf16>
    %c0_5 = arith.constant 0 : index
    %c0_6 = arith.constant 0 : index
    %8 = vector.load %arg4[%c0_5, %c0_6] : memref<16x96xbf16, #tpu.memory_space<vmem>>, vector<16x96xbf16>
    tpu.vector_store %arg4[%c0_5, %c0_6], %7 {strides = array<i32>} : memref<16x96xbf16, #tpu.memory_space<vmem>>, vector<16x96xbf16>,
    return
  }
  func.func @transform_0(%arg0: i32) -> (i32, i32) {
    %c0_i32 = arith.constant 0 : i32
    %c0_i32_0 = arith.constant 0 : i32
    return %arg0, %c0_i32 : i32, i32
  }
  func.func @transform_1(%arg0: i32) -> (i32, i32) {
    %c0_i32 = arith.constant 0 : i32
    %c0_i32_0 = arith.constant 0 : i32
    %c0_i32_1 = arith.constant 0 : i32
    return %c0_i32, %c0_i32_0 : i32, i32
  }
  func.func @transform_2(%arg0: i32) -> (i32, i32) {
    %c0_i32 = arith.constant 0 : i32
    %c0_i32_0 = arith.constant 0 : i32
    %c0_i32_1 = arith.constant 0 : i32
    return %c0_i32, %c0_i32_0 : i32, i32
  }
  func.func @transform_3(%arg0: i32) -> (i32, i32) {
    %c0_i32 = arith.constant 0 : i32
    %c0_i32_0 = arith.constant 0 : i32
    return %arg0, %c0_i32 : i32, i32
  }
}

module attributes {stable_mosaic.version = 11 : i64} {
  func.func @_proj_add_ln_kernel(%arg0: i32, %arg1: memref<16x32xbf16, #tpu.memory_space<vmem>>, %arg2: memref<16x32xf32, #tpu.memory_space<vmem>>, %arg3: memref<32x32xbf16, #tpu.memory_space<vmem>>, %arg4: memref<1x32xf32, #tpu.memory_space<vmem>>, %arg5: memref<1x32xf32, #tpu.memory_space<vmem>>, %arg6: memref<1x32xf32, #tpu.memory_space<vmem>>, %arg7: memref<16x32xf32, #tpu.memory_space<vmem>>) attributes {dimension_semantics = [#tpu.dimension_semantics<parallel>], iteration_bounds = array<i64: 1>, scalar_prefetch = 0 : i64, scratch_operands = 0 : i64, tpu.core_type = #tpu.core_type<tc>, window_params = [{transform_indices = @transform_0, window_bounds = array<i64: 16, 32>}, {transform_indices = @transform_1, window_bounds = array<i64: 16, 32>}, {pipeline_mode = #tpu.pipeline_mode<synchronous>, transform_indices = @transform_2, window_bounds = array<i64: 32, 32>}, {pipeline_mode = #tpu.pipeline_mode<synchronous>, transform_indices = @transform_3, window_bounds = array<i64: 1, 32>}, {pipeline_mode = #tpu.pipeline_mode<synchronous>, transform_indices = @transform_4, window_bounds = array<i64: 1, 32>}, {pipeline_mode = #tpu.pipeline_mode<synchronous>, transform_indices = @transform_5, window_bounds = array<i64: 1, 32>}, {transform_indices = @transform_6, window_bounds = array<i64: 16, 32>}]} {
    %c0 = arith.constant 0 : index
    %c0_0 = arith.constant 0 : index
    %0 = vector.load %arg1[%c0, %c0_0] : memref<16x32xbf16, #tpu.memory_space<vmem>>, vector<16x32xbf16>
    %c0_1 = arith.constant 0 : index
    %c0_2 = arith.constant 0 : index
    %1 = vector.load %arg3[%c0_1, %c0_2] : memref<32x32xbf16, #tpu.memory_space<vmem>>, vector<32x32xbf16>
    %cst = arith.constant dense<0.000000e+00> : vector<16x32xf32>
    %2 = tpu.matmul %0, %1, %cst {dimension_numbers = #tpu.dot_dimension_numbers<[1], [0], [0], [1], [0, 0, 1, 1], [], []>} : vector<16x32xbf16>, vector<32x32xbf16>, vector<16x32xf32> -> vector<16x32xf32>
    %c0_3 = arith.constant 0 : index
    %c0_4 = arith.constant 0 : index
    %3 = vector.load %arg4[%c0_3, %c0_4] : memref<1x32xf32, #tpu.memory_space<vmem>>, vector<1x32xf32>
    %4 = vector.broadcast %3 : vector<1x32xf32> to vector<16x32xf32>
    %5 = arith.addf %2, %4 : vector<16x32xf32>
    %c0_5 = arith.constant 0 : index
    %c0_6 = arith.constant 0 : index
    %6 = vector.load %arg2[%c0_5, %c0_6] : memref<16x32xf32, #tpu.memory_space<vmem>>, vector<16x32xf32>
    %7 = arith.addf %6, %5 : vector<16x32xf32>
    %cst_7 = arith.constant dense<0.000000e+00> : vector<16xf32>
    %8 = vector.multi_reduction <add>, %7, %cst_7 [1] : vector<16x32xf32> to vector<16xf32>
    %9 = vector.shape_cast %8 : vector<16xf32> to vector<16x1xf32>
    %cst_8 = arith.constant 3.200000e+01 : f32
    %10 = vector.broadcast %cst_8 : f32 to vector<16x1xf32>
    %11 = arith.divf %9, %10 : vector<16x1xf32>
    %12 = vector.broadcast %11 : vector<16x1xf32> to vector<16x32xf32>
    %13 = arith.subf %7, %12 : vector<16x32xf32>
    %14 = arith.mulf %13, %13 : vector<16x32xf32>
    %cst_9 = arith.constant dense<0.000000e+00> : vector<16xf32>
    %15 = vector.multi_reduction <add>, %14, %cst_9 [1] : vector<16x32xf32> to vector<16xf32>
    %16 = vector.shape_cast %15 : vector<16xf32> to vector<16x1xf32>
    %cst_10 = arith.constant 3.200000e+01 : f32
    %17 = vector.broadcast %cst_10 : f32 to vector<16x1xf32>
    %18 = arith.divf %16, %17 : vector<16x1xf32>
    %cst_11 = arith.constant 9.99999974E-6 : f32
    %19 = vector.broadcast %cst_11 : f32 to vector<16x1xf32>
    %20 = arith.addf %18, %19 : vector<16x1xf32>
    %21 = math.rsqrt %20 : vector<16x1xf32>
    %22 = vector.broadcast %11 : vector<16x1xf32> to vector<16x32xf32>
    %23 = arith.subf %7, %22 : vector<16x32xf32>
    %24 = vector.broadcast %21 : vector<16x1xf32> to vector<16x32xf32>
    %25 = arith.mulf %23, %24 : vector<16x32xf32>
    %c0_12 = arith.constant 0 : index
    %c0_13 = arith.constant 0 : index
    %26 = vector.load %arg5[%c0_12, %c0_13] : memref<1x32xf32, #tpu.memory_space<vmem>>, vector<1x32xf32>
    %27 = vector.broadcast %26 : vector<1x32xf32> to vector<16x32xf32>
    %28 = arith.mulf %25, %27 : vector<16x32xf32>
    %c0_14 = arith.constant 0 : index
    %c0_15 = arith.constant 0 : index
    %29 = vector.load %arg6[%c0_14, %c0_15] : memref<1x32xf32, #tpu.memory_space<vmem>>, vector<1x32xf32>
    %30 = vector.broadcast %29 : vector<1x32xf32> to vector<16x32xf32>
    %31 = arith.addf %28, %30 : vector<16x32xf32>
    %c0_16 = arith.constant 0 : index
    %c0_17 = arith.constant 0 : index
    %32 = vector.load %arg7[%c0_16, %c0_17] : memref<16x32xf32, #tpu.memory_space<vmem>>, vector<16x32xf32>
    tpu.vector_store %arg7[%c0_16, %c0_17], %31 {strides = array<i32>} : memref<16x32xf32, #tpu.memory_space<vmem>>, vector<16x32xf32>,
    return
  }
  func.func @transform_0(%arg0: i32) -> (i32, i32) {
    %c0_i32 = arith.constant 0 : i32
    %c0_i32_0 = arith.constant 0 : i32
    return %arg0, %c0_i32 : i32, i32
  }
  func.func @transform_1(%arg0: i32) -> (i32, i32) {
    %c0_i32 = arith.constant 0 : i32
    %c0_i32_0 = arith.constant 0 : i32
    return %arg0, %c0_i32 : i32, i32
  }
  func.func @transform_2(%arg0: i32) -> (i32, i32) {
    %c0_i32 = arith.constant 0 : i32
    %c0_i32_0 = arith.constant 0 : i32
    %c0_i32_1 = arith.constant 0 : i32
    return %c0_i32, %c0_i32_0 : i32, i32
  }
  func.func @transform_3(%arg0: i32) -> (i32, i32) {
    %c0_i32 = arith.constant 0 : i32
    %c0_i32_0 = arith.constant 0 : i32
    %c0_i32_1 = arith.constant 0 : i32
    return %c0_i32, %c0_i32_0 : i32, i32
  }
  func.func @transform_4(%arg0: i32) -> (i32, i32) {
    %c0_i32 = arith.constant 0 : i32
    %c0_i32_0 = arith.constant 0 : i32
    %c0_i32_1 = arith.constant 0 : i32
    return %c0_i32, %c0_i32_0 : i32, i32
  }
  func.func @transform_5(%arg0: i32) -> (i32, i32) {
    %c0_i32 = arith.constant 0 : i32
    %c0_i32_0 = arith.constant 0 : i32
    %c0_i32_1 = arith.constant 0 : i32
    return %c0_i32, %c0_i32_0 : i32, i32
  }
  func.func @transform_6(%arg0: i32) -> (i32, i32) {
    %c0_i32 = arith.constant 0 : i32
    %c0_i32_0 = arith.constant 0 : i32
    return %arg0, %c0_i32 : i32, i32
  }
}

module attributes {stable_mosaic.version = 11 : i64} {
  func.func @_ffn_add_ln_kernel(%arg0: i32, %arg1: memref<16x32xf32, #tpu.memory_space<vmem>>, %arg2: memref<32x64xbf16, #tpu.memory_space<vmem>>, %arg3: memref<1x64xf32, #tpu.memory_space<vmem>>, %arg4: memref<64x32xbf16, #tpu.memory_space<vmem>>, %arg5: memref<1x32xf32, #tpu.memory_space<vmem>>, %arg6: memref<1x32xf32, #tpu.memory_space<vmem>>, %arg7: memref<1x32xf32, #tpu.memory_space<vmem>>, %arg8: memref<16x32xf32, #tpu.memory_space<vmem>>) attributes {dimension_semantics = [#tpu.dimension_semantics<parallel>], iteration_bounds = array<i64: 1>, scalar_prefetch = 0 : i64, scratch_operands = 0 : i64, tpu.core_type = #tpu.core_type<tc>, window_params = [{transform_indices = @transform_0, window_bounds = array<i64: 16, 32>}, {pipeline_mode = #tpu.pipeline_mode<synchronous>, transform_indices = @transform_1, window_bounds = array<i64: 32, 64>}, {pipeline_mode = #tpu.pipeline_mode<synchronous>, transform_indices = @transform_2, window_bounds = array<i64: 1, 64>}, {pipeline_mode = #tpu.pipeline_mode<synchronous>, transform_indices = @transform_3, window_bounds = array<i64: 64, 32>}, {pipeline_mode = #tpu.pipeline_mode<synchronous>, transform_indices = @transform_4, window_bounds = array<i64: 1, 32>}, {pipeline_mode = #tpu.pipeline_mode<synchronous>, transform_indices = @transform_5, window_bounds = array<i64: 1, 32>}, {pipeline_mode = #tpu.pipeline_mode<synchronous>, transform_indices = @transform_6, window_bounds = array<i64: 1, 32>}, {transform_indices = @transform_7, window_bounds = array<i64: 16, 32>}]} {
    %c0 = arith.constant 0 : index
    %c0_0 = arith.constant 0 : index
    %0 = vector.load %arg1[%c0, %c0_0] : memref<16x32xf32, #tpu.memory_space<vmem>>, vector<16x32xf32>
    %1 = arith.truncf %0 : vector<16x32xf32> to vector<16x32xbf16>
    %c0_1 = arith.constant 0 : index
    %c0_2 = arith.constant 0 : index
    %2 = vector.load %arg2[%c0_1, %c0_2] : memref<32x64xbf16, #tpu.memory_space<vmem>>, vector<32x64xbf16>
    %cst = arith.constant dense<0.000000e+00> : vector<16x64xf32>
    %3 = tpu.matmul %1, %2, %cst {dimension_numbers = #tpu.dot_dimension_numbers<[1], [0], [0], [1], [0, 0, 1, 1], [], []>} : vector<16x32xbf16>, vector<32x64xbf16>, vector<16x64xf32> -> vector<16x64xf32>
    %c0_3 = arith.constant 0 : index
    %c0_4 = arith.constant 0 : index
    %4 = vector.load %arg3[%c0_3, %c0_4] : memref<1x64xf32, #tpu.memory_space<vmem>>, vector<1x64xf32>
    %5 = vector.broadcast %4 : vector<1x64xf32> to vector<16x64xf32>
    %6 = arith.addf %3, %5 : vector<16x64xf32>
    %cst_5 = arith.constant 0.000000e+00 : f32
    %7 = vector.broadcast %cst_5 : f32 to vector<16x64xf32>
    %8 = arith.maximumf %6, %7 : vector<16x64xf32>
    %9 = arith.truncf %8 : vector<16x64xf32> to vector<16x64xbf16>
    %c0_6 = arith.constant 0 : index
    %c0_7 = arith.constant 0 : index
    %10 = vector.load %arg4[%c0_6, %c0_7] : memref<64x32xbf16, #tpu.memory_space<vmem>>, vector<64x32xbf16>
    %cst_8 = arith.constant dense<0.000000e+00> : vector<16x32xf32>
    %11 = tpu.matmul %9, %10, %cst_8 {dimension_numbers = #tpu.dot_dimension_numbers<[1], [0], [0], [1], [0, 0, 1, 1], [], []>} : vector<16x64xbf16>, vector<64x32xbf16>, vector<16x32xf32> -> vector<16x32xf32>
    %c0_9 = arith.constant 0 : index
    %c0_10 = arith.constant 0 : index
    %12 = vector.load %arg5[%c0_9, %c0_10] : memref<1x32xf32, #tpu.memory_space<vmem>>, vector<1x32xf32>
    %13 = vector.broadcast %12 : vector<1x32xf32> to vector<16x32xf32>
    %14 = arith.addf %11, %13 : vector<16x32xf32>
    %15 = arith.addf %0, %14 : vector<16x32xf32>
    %cst_11 = arith.constant dense<0.000000e+00> : vector<16xf32>
    %16 = vector.multi_reduction <add>, %15, %cst_11 [1] : vector<16x32xf32> to vector<16xf32>
    %17 = vector.shape_cast %16 : vector<16xf32> to vector<16x1xf32>
    %cst_12 = arith.constant 3.200000e+01 : f32
    %18 = vector.broadcast %cst_12 : f32 to vector<16x1xf32>
    %19 = arith.divf %17, %18 : vector<16x1xf32>
    %20 = vector.broadcast %19 : vector<16x1xf32> to vector<16x32xf32>
    %21 = arith.subf %15, %20 : vector<16x32xf32>
    %22 = arith.mulf %21, %21 : vector<16x32xf32>
    %cst_13 = arith.constant dense<0.000000e+00> : vector<16xf32>
    %23 = vector.multi_reduction <add>, %22, %cst_13 [1] : vector<16x32xf32> to vector<16xf32>
    %24 = vector.shape_cast %23 : vector<16xf32> to vector<16x1xf32>
    %cst_14 = arith.constant 3.200000e+01 : f32
    %25 = vector.broadcast %cst_14 : f32 to vector<16x1xf32>
    %26 = arith.divf %24, %25 : vector<16x1xf32>
    %cst_15 = arith.constant 9.99999974E-6 : f32
    %27 = vector.broadcast %cst_15 : f32 to vector<16x1xf32>
    %28 = arith.addf %26, %27 : vector<16x1xf32>
    %29 = math.rsqrt %28 : vector<16x1xf32>
    %30 = vector.broadcast %19 : vector<16x1xf32> to vector<16x32xf32>
    %31 = arith.subf %15, %30 : vector<16x32xf32>
    %32 = vector.broadcast %29 : vector<16x1xf32> to vector<16x32xf32>
    %33 = arith.mulf %31, %32 : vector<16x32xf32>
    %c0_16 = arith.constant 0 : index
    %c0_17 = arith.constant 0 : index
    %34 = vector.load %arg6[%c0_16, %c0_17] : memref<1x32xf32, #tpu.memory_space<vmem>>, vector<1x32xf32>
    %35 = vector.broadcast %34 : vector<1x32xf32> to vector<16x32xf32>
    %36 = arith.mulf %33, %35 : vector<16x32xf32>
    %c0_18 = arith.constant 0 : index
    %c0_19 = arith.constant 0 : index
    %37 = vector.load %arg7[%c0_18, %c0_19] : memref<1x32xf32, #tpu.memory_space<vmem>>, vector<1x32xf32>
    %38 = vector.broadcast %37 : vector<1x32xf32> to vector<16x32xf32>
    %39 = arith.addf %36, %38 : vector<16x32xf32>
    %c0_20 = arith.constant 0 : index
    %c0_21 = arith.constant 0 : index
    %40 = vector.load %arg8[%c0_20, %c0_21] : memref<16x32xf32, #tpu.memory_space<vmem>>, vector<16x32xf32>
    tpu.vector_store %arg8[%c0_20, %c0_21], %39 {strides = array<i32>} : memref<16x32xf32, #tpu.memory_space<vmem>>, vector<16x32xf32>,
    return
  }
  func.func @transform_0(%arg0: i32) -> (i32, i32) {
    %c0_i32 = arith.constant 0 : i32
    %c0_i32_0 = arith.constant 0 : i32
    return %arg0, %c0_i32 : i32, i32
  }
  func.func @transform_1(%arg0: i32) -> (i32, i32) {
    %c0_i32 = arith.constant 0 : i32
    %c0_i32_0 = arith.constant 0 : i32
    %c0_i32_1 = arith.constant 0 : i32
    return %c0_i32, %c0_i32_0 : i32, i32
  }
  func.func @transform_2(%arg0: i32) -> (i32, i32) {
    %c0_i32 = arith.constant 0 : i32
    %c0_i32_0 = arith.constant 0 : i32
    %c0_i32_1 = arith.constant 0 : i32
    return %c0_i32, %c0_i32_0 : i32, i32
  }
  func.func @transform_3(%arg0: i32) -> (i32, i32) {
    %c0_i32 = arith.constant 0 : i32
    %c0_i32_0 = arith.constant 0 : i32
    %c0_i32_1 = arith.constant 0 : i32
    return %c0_i32, %c0_i32_0 : i32, i32
  }
  func.func @transform_4(%arg0: i32) -> (i32, i32) {
    %c0_i32 = arith.constant 0 : i32
    %c0_i32_0 = arith.constant 0 : i32
    %c0_i32_1 = arith.constant 0 : i32
    return %c0_i32, %c0_i32_0 : i32, i32
  }
  func.func @transform_5(%arg0: i32) -> (i32, i32) {
    %c0_i32 = arith.constant 0 : i32
    %c0_i32_0 = arith.constant 0 : i32
    %c0_i32_1 = arith.constant 0 : i32
    return %c0_i32, %c0_i32_0 : i32, i32
  }
  func.func @transform_6(%arg0: i32) -> (i32, i32) {
    %c0_i32 = arith.constant 0 : i32
    %c0_i32_0 = arith.constant 0 : i32
    %c0_i32_1 = arith.constant 0 : i32
    return %c0_i32, %c0_i32_0 : i32, i32
  }
  func.func @transform_7(%arg0: i32) -> (i32, i32) {
    %c0_i32 = arith.constant 0 : i32
    %c0_i32_0 = arith.constant 0 : i32
    return %arg0, %c0_i32 : i32, i32
  }
}

</mosaic_0001>

<llo_original>
// kernel: transformer_encoder_forward.9
$region0: #{transformer_encoder_forward.9}
  #allocation0 [shape = 'u32[]', space=smem, size = 0x4, offset = 0x4, fixed_abs, tag = 'smem constant byte address 0x4 - core index']
  #allocation1 [shape = 'u32[72,128]{1,0:T(1,128)}', space=vmem, size = 0x9000, scoped, tag = 'internal scratch']
  %s0 = inlined_call_operand.vmem [shape: bf16[2,8,96], index: 0, kind: input, shape index: {}]
  %s1 = inlined_call_operand.vmem [shape: bf16[2,8,32], index: 1, kind: output, shape index: {}]
  %s2 = sld [smem:[#allocation0]]
  $region37: #{transformer_encoder_forward.9} parent=0
    _
  %s4 = ssub.s32 1, %s2
  %s5 = scalar_select 0, %s4, %s2
  loop: start=0, step=1, limit=4
  $region2: #{transformer_encoder_forward.9} parent=0 // loop_pre_header
    _
  $region3: #{transformer_encoder_forward.9} parent=0 // loop_header
    %s7 = sphi 0, %s11
    %p8 = scmp.ge.s32.totalorder %s7, 4
    %s17 = sphi 0, %s19
    %s20 = sphi 0, %s17
    %s21 = sphi 0, %s20
    %s37 = sphi 0, %s21
    %s43 = sphi 0, %s45
    %s46 = sphi 0, %s43
    %s47 = sphi 0, %s46
    %s63 = sphi 0, %s47
  $region4: #{transformer_encoder_forward.9} parent=0 // loop_header_branch
    %10 = sbr.rel (%p8) target = $region8
  $region5: #{transformer_encoder_forward.9} parent=0 // loop_body
    %s12 = ssub.s32 %s7, 1
    %s13 = ssub.s32 %s7, 2
    %s14 = sadd.s32 %s7, 1
    %s15 = ssub.s32 %s7, %s14
    %p16 = scmp.eq.s32.totalorder %s15, 0
    %s18 = sadd.s32 %s17, 1
    %s19 = scalar_select %p16, %s17, %s18
    %p22 = pneg %p16
    %p23 = scmp.eq.s32.totalorder %s7, 1
    %p24 = por %p22, %p23
    %p25 = scmp.ne.s32.totalorder %s17, %s20
    %p26 = scmp.eq.s32.totalorder %s7, 0
    %p27 = por %p25, %p26
    %p28 = scmp.ne.s32.totalorder %s17, %s20
    %p29 = scmp.eq.s32.totalorder %s12, 1
    %p30 = por %p28, %p29
    %p31 = scmp.ne.s32.totalorder %s20, %s21
    %p32 = scmp.eq.s32.totalorder %s12, 0
    %p33 = por %p31, %p32
    %p34 = scmp.ne.s32.totalorder %s20, %s21
    %p35 = scmp.eq.s32.totalorder %s13, 1
    %p36 = por %p34, %p35
    %p38 = scmp.ne.s32.totalorder %s21, %s37
    %p39 = scmp.eq.s32.totalorder %s13, 0
    %p40 = por %p38, %p39
    %s41 = ssub.s32 %s7, %s14
    %p42 = scmp.eq.s32.totalorder %s41, 0
    %s44 = sadd.s32 %s43, 1
    %s45 = scalar_select %p42, %s43, %s44
    %p48 = pneg %p42
    %p49 = scmp.eq.s32.totalorder %s7, 1
    %p50 = por %p48, %p49
    %p51 = scmp.ne.s32.totalorder %s43, %s46
    %p52 = scmp.eq.s32.totalorder %s7, 0
    %p53 = por %p51, %p52
    %p54 = scmp.ne.s32.totalorder %s43, %s46
    %p55 = scmp.eq.s32.totalorder %s12, 1
    %p56 = por %p54, %p55
    %p57 = scmp.ne.s32.totalorder %s46, %s47
    %p58 = scmp.eq.s32.totalorder %s12, 0
    %p59 = por %p57, %p58
    %p60 = scmp.ne.s32.totalorder %s46, %s47
    %p61 = scmp.eq.s32.totalorder %s13, 1
    %p62 = por %p60, %p61
    %p64 = scmp.ne.s32.totalorder %s47, %s63
    %p65 = scmp.eq.s32.totalorder %s13, 0
    %p66 = por %p64, %p65
    %p67 = scmp.le.s32.totalorder 1, %s7
    %p68 = scmp.lt.s32.totalorder %s7, 3
    %p69 = pnand %p67, %p68
    %p70 = pneg %p69
    // Predicated region
    $region9: #{transformer_encoder_forward.9} parent=5 // pred_check
      _
    $region10: #{transformer_encoder_forward.9} parent=5 // pred_check_branch
      %72 = sbr.rel (%p69) target = $region12
    $region11: #{transformer_encoder_forward.9} parent=5 // pred_region
      %s73 = ssub.s32 %s7, 1
    $region12: #{transformer_encoder_forward.9} parent=5 // pred_fallthru
      _
    %p74 = scmp.lt.s32.totalorder %s7, 2
    // Predicated region
    $region13: #{transformer_encoder_forward.9} parent=5 // pred_check
      %p75 = pneg %p74
    $region14: #{transformer_encoder_forward.9} parent=5 // pred_check_branch
      %77 = sbr.rel (%p75) target = $region16
    $region15: #{transformer_encoder_forward.9} parent=5 // pred_region
      // Predicated region
      $region17: #{transformer_encoder_forward.9} parent=15 // pred_check
        %p78 = pneg %p27
      $region18: #{transformer_encoder_forward.9} parent=15 // pred_check_branch
        %80 = sbr.rel (%p78) target = $region20
      $region19: #{transformer_encoder_forward.9} parent=15 // pred_region
        %p81 = scmp.lt.s32.totalorder %s7, 1
        %s82 = scalar_select %p81, %s7, 1
        %s83 = smul.addr %s82, 4
        %s84 = scalar_lea.vmem %s0, %s83
      $region20: #{transformer_encoder_forward.9} parent=15 // pred_fallthru
        _
    $region16: #{transformer_encoder_forward.9} parent=5 // pred_fallthru
      _
    %p85 = scmp.le.s32.totalorder 1, %s7
    %p86 = scmp.lt.s32.totalorder %s7, 3
    %p87 = pnand %p85, %p86
    %p88 = pneg %p87
    // Predicated region
    $region21: #{transformer_encoder_forward.9} parent=5 // pred_check
      _
    $region22: #{transformer_encoder_forward.9} parent=5 // pred_check_branch
      %90 = sbr.rel (%p87) target = $region24
    $region23: #{transformer_encoder_forward.9} parent=5 // pred_region
      %s91 = ssub.s32 %s7, 1
      %p92 = scmp.lt.s32.totalorder %s12, 1
      %s93 = scalar_select %p92, %s12, 1
      %s94 = smul.addr %s93, 4
      %s95 = scalar_lea.vmem %s0, %s94
      %p96 = pneg %p33
      %p97 = pneg %p30
      %p98 = pneg %p59
      %p99 = pneg %p56
      %p100 = scmp.lt.s32.totalorder %s12, 1
      %s101 = scalar_select %p100, %s12, 1
      %s102 = smul.addr %s101, 4
      %s103 = scalar_lea.vmem %s1, %s102
      %p104 = scmp.lt.s32.totalorder %s12, 1
      %s105 = scalar_select %p104, %s12, 1
      %s106 = smul.addr %s105, 4
      %s107 = scalar_lea.vmem %s0, %s106
      %p108 = scmp.lt.s32.totalorder %s12, 1
      %s109 = scalar_select %p108, %s12, 1
      %s110 = smul.addr %s109, 4
      %s111 = scalar_lea.vmem %s1, %s110
      %v113 = vld [vmem:[%s107] sm:$0xf]
      %v115 = vunpack.c.l.b16 %v113
      %v116 = vpack.c.b16 %v115, %v115
      %117 = vrot.lane.b32.xlu0 %v116, 96
      %v118 = vpop.permute.xlu0 %117
      %vm119 = vcmask 64512
      %v121 = vsel %vm119, %v113, 0
      %v124 = vsel %vm119, %v118, 0
      %126 = vmatpush.bf16.xpose.msra.mxu0 0
      %127 = vmatpush.bf16.xpose.msra.mxu0 0
      %128 = vmatpush.bf16.xpose.msra.mxu0 0
      %129 = vmatpush.bf16.xpose.msra.mxu0 0
      %130 = vmatpush.bf16.xpose.msra.mxu0 0
      %131 = vmatpush.bf16.xpose.msra.mxu0 0
      %132 = vmatpush.bf16.xpose.msra.mxu0 0
      %133 = vmatpush.bf16.xpose.msra.mxu0 %v124
      %134 = vmatmul.bf16.gmra.mxu0 %v121
      %v135 = vpop.f32.mrf.mxu0
      %v136 = vadd.f32 0.0, %v135
      %v137 = vpop.f32.mrf.mxu0
      %138 = vdwg.mxu0
      %v139 = vsel %vm119, %v136, -inf
      %140 = vmax.xlane.f32.xlu0 %v139
      %v141 = vpop.xlane.xlu0 %140
      %v142 = vsub.f32 %v136, %v141
      %v143 = vmul.f32 %v142, 1.442695
      %v144 = vpow.pop %v143
      %v145 = vsel %vm119, %v144, 0.0
      %146 = vadd.xlane.f32.xlu0 %v145
      %v147 = vpop.xlane.xlu0 %146
      %v148 = vrcp.pop %v147
      %v149 = vmul.f32 %v144, %v148
      %v150 = vpack.c.bf16 %v149, %v149
      %151 = vrot.lane.b32.xlu0 %v116, 64
      %v152 = vpop.permute.xlu0 %151
      %v154 = vsel %vm119, %v150, 0
      %vm156 = vcmask 1043456
      %v158 = vsel %vm156, %v152, 0
      %160 = vmatpush.bf16.msra.mxu0 0
      %161 = vmatpush.bf16.msra.mxu0 0
      %162 = vmatpush.bf16.msra.mxu0 0
      %163 = vmatpush.bf16.msra.mxu0 0
      %164 = vmatpush.bf16.msra.mxu0 0
      %165 = vmatpush.bf16.msra.mxu0 0
      %166 = vmatpush.bf16.msra.mxu0 0
      %167 = vmatpush.bf16.msra.mxu0 %v158
      %168 = vmatmul.bf16.gmra.mxu0 %v154
      %v169 = vpop.f32.mrf.mxu0
      %v170 = vadd.f32 0.0, %v169
      %v171 = vpop.f32.mrf.mxu0
      %172 = vdwg.mxu0
      %v173 = vpack.c.bf16 %v170, %v170
      %vm174 = vcmask 60416
      %175 = vst.msk [vmem:[%s111] sm:$0xf] %vm174, %v173
      %v176 = vld [vmem:[%s107] sm:$0xf]
      %v178 = vunpack.c.l.b16 %v176
      %v179 = vpack.c.b16 %v178, %v178
      %180 = vrot.lane.b32.xlu0 %v179, 120
      %v181 = vpop.permute.xlu0 %180
      %182 = vrot.lane.b32.xlu0 %v179, 88
      %v183 = vpop.permute.xlu0 %182
      %v185 = vsel %vm119, %v181, 0
      %v188 = vsel %vm119, %v183, 0
      %190 = vmatpush.bf16.xpose.msra.mxu0 0
      %191 = vmatpush.bf16.xpose.msra.mxu0 0
      %192 = vmatpush.bf16.xpose.msra.mxu0 0
      %193 = vmatpush.bf16.xpose.msra.mxu0 0
      %194 = vmatpush.bf16.xpose.msra.mxu0 0
      %195 = vmatpush.bf16.xpose.msra.mxu0 0
      %196 = vmatpush.bf16.xpose.msra.mxu0 0
      %197 = vmatpush.bf16.xpose.msra.mxu0 %v188
      %198 = vmatmul.bf16.gmra.mxu0 %v185
      %v199 = vpop.f32.mrf.mxu0
      %v200 = vadd.f32 0.0, %v199
      %v201 = vpop.f32.mrf.mxu0
      %202 = vdwg.mxu0
      %v203 = vsel %vm119, %v200, -inf
      %204 = vmax.xlane.f32.xlu0 %v203
      %v205 = vpop.xlane.xlu0 %204
      %v206 = vsub.f32 %v200, %v205
      %v207 = vmul.f32 %v206, 1.442695
      %v208 = vpow.pop %v207
      %v209 = vsel %vm119, %v208, 0.0
      %210 = vadd.xlane.f32.xlu0 %v209
      %v211 = vpop.xlane.xlu0 %210
      %v212 = vrcp.pop %v211
      %v213 = vmul.f32 %v208, %v212
      %v214 = vpack.c.bf16 %v213, %v213
      %215 = vrot.lane.b32.xlu0 %v179, 56
      %v216 = vpop.permute.xlu0 %215
      %v218 = vsel %vm119, %v214, 0
      %v221 = vsel %vm156, %v216, 0
      %223 = vmatpush.bf16.msra.mxu0 0
      %224 = vmatpush.bf16.msra.mxu0 0
      %225 = vmatpush.bf16.msra.mxu0 0
      %226 = vmatpush.bf16.msra.mxu0 0
      %227 = vmatpush.bf16.msra.mxu0 0
      %228 = vmatpush.bf16.msra.mxu0 0
      %229 = vmatpush.bf16.msra.mxu0 0
      %230 = vmatpush.bf16.msra.mxu0 %v221
      %231 = vmatmul.bf16.gmra.mxu0 %v218
      %v232 = vpop.f32.mrf.mxu0
      %v233 = vadd.f32 0.0, %v232
      %v234 = vpop.f32.mrf.mxu0
      %235 = vdwg.mxu0
      %v236 = vpack.c.bf16 %v233, %v233
      %238 = vrot.lane.b32.xlu0 %v236, 8
      %v239 = vpop.permute.xlu0 %238
      %vm241 = vcmask 126016
      %242 = vst.msk [vmem:[%s111] sm:$0xf] %vm241, %v239
      %v243 = vld [vmem:[%s107] sm:$0xf]
      %v245 = vunpack.c.l.b16 %v243
      %v246 = vpack.c.b16 %v245, %v245
      %247 = vrot.lane.b32.xlu0 %v246, 112
      %v248 = vpop.permute.xlu0 %247
      %249 = vrot.lane.b32.xlu0 %v246, 80
      %v250 = vpop.permute.xlu0 %249
      %v252 = vsel %vm119, %v248, 0
      %v255 = vsel %vm119, %v250, 0
      %257 = vmatpush.bf16.xpose.msra.mxu0 0
      %258 = vmatpush.bf16.xpose.msra.mxu0 0
      %259 = vmatpush.bf16.xpose.msra.mxu0 0
      %260 = vmatpush.bf16.xpose.msra.mxu0 0
      %261 = vmatpush.bf16.xpose.msra.mxu0 0
      %262 = vmatpush.bf16.xpose.msra.mxu0 0
      %263 = vmatpush.bf16.xpose.msra.mxu0 0
      %264 = vmatpush.bf16.xpose.msra.mxu0 %v255
      %265 = vmatmul.bf16.gmra.mxu0 %v252
      %v266 = vpop.f32.mrf.mxu0
      %v267 = vadd.f32 0.0, %v266
      %v268 = vpop.f32.mrf.mxu0
      %269 = vdwg.mxu0
      %v270 = vsel %vm119, %v267, -inf
      %271 = vmax.xlane.f32.xlu0 %v270
      %v272 = vpop.xlane.xlu0 %271
      %v273 = vsub.f32 %v267, %v272
      %v274 = vmul.f32 %v273, 1.442695
      %v275 = vpow.pop %v274
      %v276 = vsel %vm119, %v275, 0.0
      %277 = vadd.xlane.f32.xlu0 %v276
      %v278 = vpop.xlane.xlu0 %277
      %v279 = vrcp.pop %v278
      %v280 = vmul.f32 %v275, %v279
      %v281 = vpack.c.bf16 %v280, %v280
      %282 = vrot.lane.b32.xlu0 %v246, 48
      %v283 = vpop.permute.xlu0 %282
      %v285 = vsel %vm119, %v281, 0
      %v288 = vsel %vm156, %v283, 0
      %290 = vmatpush.bf16.msra.mxu0 0
      %291 = vmatpush.bf16.msra.mxu0 0
      %292 = vmatpush.bf16.msra.mxu0 0
      %293 = vmatpush.bf16.msra.mxu0 0
      %294 = vmatpush.bf16.msra.mxu0 0
      %295 = vmatpush.bf16.msra.mxu0 0
      %296 = vmatpush.bf16.msra.mxu0 0
      %297 = vmatpush.bf16.msra.mxu0 %v288
      %298 = vmatmul.bf16.gmra.mxu0 %v285
      %v299 = vpop.f32.mrf.mxu0
      %v300 = vadd.f32 0.0, %v299
      %v301 = vpop.f32.mrf.mxu0
      %302 = vdwg.mxu0
      %v303 = vpack.c.bf16 %v300, %v300
      %305 = vrot.lane.b32.xlu0 %v303, 16
      %v306 = vpop.permute.xlu0 %305
      %vm308 = vcmask 191616
      %309 = vst.msk [vmem:[%s111] sm:$0xf] %vm308, %v306
      %v310 = vld [vmem:[%s107] sm:$0xf]
      %v312 = vunpack.c.l.b16 %v310
      %v313 = vpack.c.b16 %v312, %v312
      %314 = vrot.lane.b32.xlu0 %v313, 104
      %v315 = vpop.permute.xlu0 %314
      %316 = vrot.lane.b32.xlu0 %v313, 72
      %v317 = vpop.permute.xlu0 %316
      %v319 = vsel %vm119, %v315, 0
      %v322 = vsel %vm119, %v317, 0
      %324 = vmatpush.bf16.xpose.msra.mxu0 0
      %325 = vmatpush.bf16.xpose.msra.mxu0 0
      %326 = vmatpush.bf16.xpose.msra.mxu0 0
      %327 = vmatpush.bf16.xpose.msra.mxu0 0
      %328 = vmatpush.bf16.xpose.msra.mxu0 0
      %329 = vmatpush.bf16.xpose.msra.mxu0 0
      %330 = vmatpush.bf16.xpose.msra.mxu0 0
      %331 = vmatpush.bf16.xpose.msra.mxu0 %v322
      %332 = vmatmul.bf16.gmra.mxu0 %v319
      %v333 = vpop.f32.mrf.mxu0
      %v334 = vadd.f32 0.0, %v333
      %v335 = vpop.f32.mrf.mxu0
      %336 = vdwg.mxu0
      %v337 = vsel %vm119, %v334, -inf
      %338 = vmax.xlane.f32.xlu0 %v337
      %v339 = vpop.xlane.xlu0 %338
      %v340 = vsub.f32 %v334, %v339
      %v341 = vmul.f32 %v340, 1.442695
      %v342 = vpow.pop %v341
      %v343 = vsel %vm119, %v342, 0.0
      %344 = vadd.xlane.f32.xlu0 %v343
      %v345 = vpop.xlane.xlu0 %344
      %v346 = vrcp.pop %v345
      %v347 = vmul.f32 %v342, %v346
      %v348 = vpack.c.bf16 %v347, %v347
      %349 = vrot.lane.b32.xlu0 %v313, 40
      %v350 = vpop.permute.xlu0 %349
      %v352 = vsel %vm119, %v348, 0
      %v355 = vsel %vm156, %v350, 0
      %357 = vmatpush.bf16.msra.mxu0 0
      %358 = vmatpush.bf16.msra.mxu0 0
      %359 = vmatpush.bf16.msra.mxu0 0
      %360 = vmatpush.bf16.msra.mxu0 0
      %361 = vmatpush.bf16.msra.mxu0 0
      %362 = vmatpush.bf16.msra.mxu0 0
      %363 = vmatpush.bf16.msra.mxu0 0
      %364 = vmatpush.bf16.msra.mxu0 %v355
      %365 = vmatmul.bf16.gmra.mxu0 %v352
      %v366 = vpop.f32.mrf.mxu0
      %v367 = vadd.f32 0.0, %v366
      %v368 = vpop.f32.mrf.mxu0
      %369 = vdwg.mxu0
      %v370 = vpack.c.bf16 %v367, %v367
      %372 = vrot.lane.b32.xlu0 %v370, 24
      %v373 = vpop.permute.xlu0 %372
      %vm375 = vcmask 257216
      %376 = vst.msk [vmem:[%s111] sm:$0xf] %vm375, %v373
      %p377 = scmp.lt.s32.totalorder %s12, 1
      %s378 = scalar_select %p377, %s12, 1
      %s379 = smul.addr %s378, 4
      %s380 = scalar_lea.vmem %s1, %s379
      // Predicated region
      $region25: #{transformer_encoder_forward.9} parent=23 // pred_check
        %p381 = pneg %p56
      $region26: #{transformer_encoder_forward.9} parent=23 // pred_check_branch
        %383 = sbr.rel (%p381) target = $region28
      $region27: #{transformer_encoder_forward.9} parent=23 // pred_region
        _
      $region28: #{transformer_encoder_forward.9} parent=23 // pred_fallthru
        _
    $region24: #{transformer_encoder_forward.9} parent=5 // pred_fallthru
      _
    %p384 = scmp.le.s32.totalorder 2, %s7
    // Predicated region
    $region29: #{transformer_encoder_forward.9} parent=5 // pred_check
      %p385 = pneg %p384
    $region30: #{transformer_encoder_forward.9} parent=5 // pred_check_branch
      %387 = sbr.rel (%p385) target = $region32
    $region31: #{transformer_encoder_forward.9} parent=5 // pred_region
      %s388 = ssub.s32 %s7, 2
      // Predicated region
      $region33: #{transformer_encoder_forward.9} parent=31 // pred_check
        %p389 = pneg %p62
      $region34: #{transformer_encoder_forward.9} parent=31 // pred_check_branch
        %391 = sbr.rel (%p389) target = $region36
      $region35: #{transformer_encoder_forward.9} parent=31 // pred_region
        %p392 = scmp.lt.s32.totalorder %s13, 1
        %s393 = scalar_select %p392, %s13, 1
        %s394 = smul.addr %s393, 4
        %s395 = scalar_lea.vmem %s1, %s394
      $region36: #{transformer_encoder_forward.9} parent=31 // pred_fallthru
        _
    $region32: #{transformer_encoder_forward.9} parent=5 // pred_fallthru
      _
  $region6: #{transformer_encoder_forward.9} parent=0 // loop_footer
    %s11 = sadd.s32 1, %s7
  $region7: #{transformer_encoder_forward.9} parent=0 // loop_footer_branch
    %6 = sbr.rel target = $region3
  $region8: #{transformer_encoder_forward.9} parent=0 // loop_exit
    _

// kernel: transformer_encoder_forward.8
$region0: #{transformer_encoder_forward.8}
  #allocation0 [shape = 'u32[]', space=smem, size = 0x4, offset = 0x4, fixed_abs, tag = 'smem constant byte address 0x4 - core index']
  #allocation1 [shape = 'u32[72,128]{1,0:T(1,128)}', space=vmem, size = 0x9000, scoped, tag = 'internal scratch']
  %s0 = inlined_call_operand.hbm [shape: f32[16,32], index: 0, kind: input, shape index: {}]
  %s1 = inlined_call_operand.hbm [shape: bf16[32,96], index: 1, kind: input, shape index: {}]
  %s2 = inlined_call_operand.hbm [shape: f32[1,96], index: 2, kind: input, shape index: {}]
  %s3 = inlined_call_operand.vmem [shape: bf16[16,96], index: 3, kind: output, shape index: {}]
  %s4 = sld [smem:[#allocation0]]
  $region34: #{transformer_encoder_forward.8} parent=0
    _
  %s6 = ssub.s32 1, %s4
  %s7 = scalar_select 0, %s6, %s4
  $region1: #{transformer_encoder_forward.8} parent=0
    #allocation2 [shape = 'u8[8192]{0}', space=vmem, size = 0x2000, scoped, tag = 'input window, operand 0, single buffered']
    #allocation3 [shape = 's32[1]{0}', space=sflag, size = 0x4, scoped, tag = 'scoped memory for transformer_encoder_forward.8']
    #allocation4 [shape = 'u8[8192]{0}', space=vmem, size = 0x2000, scoped, tag = 'input window, operand 1, single buffered']
    #allocation5 [shape = 's32[1]{0}', space=sflag, size = 0x4, scoped, tag = 'scoped memory for transformer_encoder_forward.8']
    #allocation6 [shape = 'u8[512]{0}', space=vmem, size = 0x400, scoped, tag = 'input window, operand 2, single buffered']
    %8 = vsyncpa [#allocation3], 0
    %9 = vsyncpa [#allocation5], 0
    // Predicated region
    $region2: #{transformer_encoder_forward.8} parent=1 // pred_check
      _
    $region3: #{transformer_encoder_forward.8} parent=1 // pred_check_branch
      %11 = sbr.rel (0) target = $region5
    $region4: #{transformer_encoder_forward.8} parent=1 // pred_region
      %13 = vsyncadd [#allocation3], 0
      %s14 = sshll.u32 %s0, 4
      %s15 = int_to_ptr.hbm [resolvable:$true] %s14
      %s16 = sshll.u32 [#allocation2], 4
      %s17 = int_to_ptr.vmem [resolvable:$true] %s16
      %22 = dma.hbm_to_vmem [thread:$0]  %s15, 256, %s17, [#allocation3], 128, 128, 8
    $region5: #{transformer_encoder_forward.8} parent=1 // pred_fallthru
      _
    // Predicated region
    $region6: #{transformer_encoder_forward.8} parent=1 // pred_check
      _
    $region7: #{transformer_encoder_forward.8} parent=1 // pred_check_branch
      %24 = sbr.rel (0) target = $region9
    $region8: #{transformer_encoder_forward.8} parent=1 // pred_region
      %26 = vsyncadd [#allocation5], 0
      %s27 = sshll.u32 %s1, 4
      %s28 = int_to_ptr.hbm [resolvable:$true] %s27
      %s29 = sshll.u32 [#allocation4], 4
      %s30 = int_to_ptr.vmem [resolvable:$true] %s29
      %35 = dma.hbm_to_vmem [thread:$0]  %s28, 256, %s30, [#allocation5], 64, 64, 4
    $region9: #{transformer_encoder_forward.8} parent=1 // pred_fallthru
      _
    // Predicated region
    $region10: #{transformer_encoder_forward.8} parent=1 // pred_check
      _
    $region11: #{transformer_encoder_forward.8} parent=1 // pred_check_branch
      %37 = sbr.rel (0) target = $region13
    $region12: #{transformer_encoder_forward.8} parent=1 // pred_region
      %39 = vsyncadd [#allocation5], 0
      %s41 = sshll.u32 %s2, 4
      %s42 = int_to_ptr.hbm [resolvable:$true] %s41
      %s43 = sshll.u32 [#allocation6], 4
      %s44 = int_to_ptr.vmem [resolvable:$true] %s43
      %46 = dma.hbm_to_vmem [thread:$0]  %s42, 16, %s44, [#allocation5]
    $region13: #{transformer_encoder_forward.8} parent=1 // pred_fallthru
      _
    // Predicated region
    $region14: #{transformer_encoder_forward.8} parent=1 // pred_check
      _
    $region15: #{transformer_encoder_forward.8} parent=1 // pred_check_branch
      %48 = sbr.rel (0) target = $region17
    $region16: #{transformer_encoder_forward.8} parent=1 // pred_region
      %50 = dma.done [#allocation3], 256
    $region17: #{transformer_encoder_forward.8} parent=1 // pred_fallthru
      _
    // Predicated region
    $region18: #{transformer_encoder_forward.8} parent=1 // pred_check
      _
    $region19: #{transformer_encoder_forward.8} parent=1 // pred_check_branch
      %52 = sbr.rel (0) target = $region21
    $region20: #{transformer_encoder_forward.8} parent=1 // pred_region
      %54 = dma.done [#allocation5], 256
    $region21: #{transformer_encoder_forward.8} parent=1 // pred_fallthru
      _
    // Predicated region
    $region22: #{transformer_encoder_forward.8} parent=1 // pred_check
      _
    $region23: #{transformer_encoder_forward.8} parent=1 // pred_check_branch
      %56 = sbr.rel (0) target = $region25
    $region24: #{transformer_encoder_forward.8} parent=1 // pred_region
      %58 = dma.done [#allocation5], 16
    $region25: #{transformer_encoder_forward.8} parent=1 // pred_fallthru
      _
    %v60 = vld [vmem:[#allocation2] sm:$0xff]
    %v61 = vld [vmem:[#allocation2 + $0x8] sm:$0xff]
    %v62 = vpack.c.bf16 %v61, %v60
    %v63 = vld [vmem:[#allocation4] sm:$0xf]
    %v64 = vld [vmem:[#allocation4 + $0x4] sm:$0xf]
    %v65 = vld [vmem:[#allocation4 + $0x8] sm:$0xf]
    %v66 = vld [vmem:[#allocation4 + $0xc] sm:$0xf]
    %v67 = vld [vmem:[#allocation6] sm:$0x1]
    %v69 = vperm.slane %v67, 0
    %v75 = vunpack.c.l.b16 %v63
    %v76 = vunpack.c.l.b16 %v64
    %v77 = vunpack.c.l.b16 %v65
    %v78 = vunpack.c.l.b16 %v66
    %v79 = vpack.c.b16 %v76, %v75
    %v80 = vpack.c.b16 %v78, %v77
    %vm83 = vcmask 261120
    %v85 = vsel %vm83, %v62, 0
    %87 = vmatpush.bf16.msra.mxu0 0
    %88 = vmatpush.bf16.msra.mxu0 0
    %89 = vmatpush.bf16.msra.mxu0 0
    %90 = vmatpush.bf16.msra.mxu0 0
    %91 = vmatpush.bf16.msra.mxu0 0
    %92 = vmatpush.bf16.msra.mxu0 0
    %93 = vmatpush.bf16.msra.mxu0 %v80
    %94 = vmatpush.bf16.msra.mxu0 %v79
    %95 = vmatmul.bf16.gmra.mxu0 %v85
    %v96 = vpop.f32.mrf.mxu0
    %v97 = vadd.f32 %v69, %v96
    %v98 = vpop.f32.mrf.mxu0
    %v99 = vadd.f32 %v69, %v98
    %100 = vdwg.mxu0
    %v101 = vpack.c.bf16 %v97, %v97
    %v102 = vpack.c.bf16 %v99, %v99
    %vm103 = vcmask 781312
    %104 = vst.msk [vmem:[%s3] sm:$0xf] %vm103, %v101
    %105 = vst.msk [vmem:[%s3 + $0x4] sm:$0xf] %vm103, %v102
    // Predicated region
    $region26: #{transformer_encoder_forward.8} parent=1 // pred_check
      _
    $region27: #{transformer_encoder_forward.8} parent=1 // pred_check_branch
      %107 = sbr.rel (0) target = $region29
    $region28: #{transformer_encoder_forward.8} parent=1 // pred_region
      _
    $region29: #{transformer_encoder_forward.8} parent=1 // pred_fallthru
      _
    // Predicated region
    $region30: #{transformer_encoder_forward.8} parent=1 // pred_check
      _
    $region31: #{transformer_encoder_forward.8} parent=1 // pred_check_branch
      %109 = sbr.rel (0) target = $region33
    $region32: #{transformer_encoder_forward.8} parent=1 // pred_region
      _
    $region33: #{transformer_encoder_forward.8} parent=1 // pred_fallthru
      _
    %110 = vsyncpa [#allocation3], 1
    %111 = vsyncpa [#allocation5], 1

// kernel: transformer_encoder_forward.10
$region0: #{transformer_encoder_forward.10}
  #allocation0 [shape = 'u32[]', space=smem, size = 0x4, offset = 0x4, fixed_abs, tag = 'smem constant byte address 0x4 - core index']
  #allocation1 [shape = 'u32[72,128]{1,0:T(1,128)}', space=vmem, size = 0x9000, scoped, tag = 'internal scratch']
  %s0 = inlined_call_operand.vmem [shape: bf16[16,32], index: 0, kind: input, shape index: {}]
  %s1 = inlined_call_operand.hbm [shape: f32[16,32], index: 1, kind: input, shape index: {}]
  %s2 = inlined_call_operand.hbm [shape: bf16[32,32], index: 2, kind: input, shape index: {}]
  %s3 = inlined_call_operand.hbm [shape: f32[1,32], index: 3, kind: input, shape index: {}]
  %s4 = inlined_call_operand.hbm [shape: f32[1,32], index: 4, kind: input, shape index: {}]
  %s5 = inlined_call_operand.hbm [shape: f32[1,32], index: 5, kind: input, shape index: {}]
  %s6 = inlined_call_operand.vmem [shape: f32[16,32], index: 6, kind: output, shape index: {}]
  %s7 = sld [smem:[#allocation0]]
  $region54: #{transformer_encoder_forward.10} parent=0
    _
  %s9 = ssub.s32 1, %s7
  %s10 = scalar_select 0, %s9, %s7
  $region1: #{transformer_encoder_forward.10} parent=0
    #allocation2 [shape = 'u8[8192]{0}', space=vmem, size = 0x2000, scoped, tag = 'input window, operand 1, single buffered']
    #allocation3 [shape = 's32[1]{0}', space=sflag, size = 0x4, scoped, tag = 'scoped memory for transformer_encoder_forward.10']
    #allocation4 [shape = 'u8[8192]{0}', space=vmem, size = 0x2000, scoped, tag = 'input window, operand 2, single buffered']
    #allocation5 [shape = 's32[1]{0}', space=sflag, size = 0x4, scoped, tag = 'scoped memory for transformer_encoder_forward.10']
    #allocation6 [shape = 'u8[512]{0}', space=vmem, size = 0x400, scoped, tag = 'input window, operand 3, single buffered']
    #allocation7 [shape = 'u8[512]{0}', space=vmem, size = 0x400, scoped, tag = 'input window, operand 4, single buffered']
    #allocation8 [shape = 's32[1]{0}', space=sflag, size = 0x4, scoped, tag = 'scoped memory for transformer_encoder_forward.10']
    #allocation9 [shape = 'u8[512]{0}', space=vmem, size = 0x400, scoped, tag = 'input window, operand 5, single buffered']
    %11 = vsyncpa [#allocation3], 0
    %12 = vsyncpa [#allocation5], 0
    %13 = vsyncpa [#allocation8], 0
    // Predicated region
    $region2: #{transformer_encoder_forward.10} parent=1 // pred_check
      _
    $region3: #{transformer_encoder_forward.10} parent=1 // pred_check_branch
      %15 = sbr.rel (0) target = $region5
    $region4: #{transformer_encoder_forward.10} parent=1 // pred_region
      _
    $region5: #{transformer_encoder_forward.10} parent=1 // pred_fallthru
      _
    // Predicated region
    $region6: #{transformer_encoder_forward.10} parent=1 // pred_check
      _
    $region7: #{transformer_encoder_forward.10} parent=1 // pred_check_branch
      %17 = sbr.rel (0) target = $region9
    $region8: #{transformer_encoder_forward.10} parent=1 // pred_region
      %19 = vsyncadd [#allocation3], 0
      %s20 = sshll.u32 %s1, 4
      %s21 = int_to_ptr.hbm [resolvable:$true] %s20
      %s22 = sshll.u32 [#allocation2], 4
      %s23 = int_to_ptr.vmem [resolvable:$true] %s22
      %28 = dma.hbm_to_vmem [thread:$0]  %s21, 256, %s23, [#allocation3], 128, 128, 8
    $region9: #{transformer_encoder_forward.10} parent=1 // pred_fallthru
      _
    // Predicated region
    $region10: #{transformer_encoder_forward.10} parent=1 // pred_check
      _
    $region11: #{transformer_encoder_forward.10} parent=1 // pred_check_branch
      %30 = sbr.rel (0) target = $region13
    $region12: #{transformer_encoder_forward.10} parent=1 // pred_region
      %32 = vsyncadd [#allocation5], 0
      %s33 = sshll.u32 %s2, 4
      %s34 = int_to_ptr.hbm [resolvable:$true] %s33
      %s35 = sshll.u32 [#allocation4], 4
      %s36 = int_to_ptr.vmem [resolvable:$true] %s35
      %41 = dma.hbm_to_vmem [thread:$0]  %s34, 256, %s36, [#allocation5], 64, 64, 4
    $region13: #{transformer_encoder_forward.10} parent=1 // pred_fallthru
      _
    // Predicated region
    $region14: #{transformer_encoder_forward.10} parent=1 // pred_check
      _
    $region15: #{transformer_encoder_forward.10} parent=1 // pred_check_branch
      %43 = sbr.rel (0) target = $region17
    $region16: #{transformer_encoder_forward.10} parent=1 // pred_region
      %45 = vsyncadd [#allocation5], 0
      %s47 = sshll.u32 %s3, 4
      %s48 = int_to_ptr.hbm [resolvable:$true] %s47
      %s49 = sshll.u32 [#allocation6], 4
      %s50 = int_to_ptr.vmem [resolvable:$true] %s49
      %52 = dma.hbm_to_vmem [thread:$0]  %s48, 16, %s50, [#allocation5]
    $region17: #{transformer_encoder_forward.10} parent=1 // pred_fallthru
      _
    // Predicated region
    $region18: #{transformer_encoder_forward.10} parent=1 // pred_check
      _
    $region19: #{transformer_encoder_forward.10} parent=1 // pred_check_branch
      %54 = sbr.rel (0) target = $region21
    $region20: #{transformer_encoder_forward.10} parent=1 // pred_region
      %56 = vsyncadd [#allocation8], 0
      %s58 = sshll.u32 %s4, 4
      %s59 = int_to_ptr.hbm [resolvable:$true] %s58
      %s60 = sshll.u32 [#allocation7], 4
      %s61 = int_to_ptr.vmem [resolvable:$true] %s60
      %63 = dma.hbm_to_vmem [thread:$0]  %s59, 16, %s61, [#allocation8]
    $region21: #{transformer_encoder_forward.10} parent=1 // pred_fallthru
      _
    // Predicated region
    $region22: #{transformer_encoder_forward.10} parent=1 // pred_check
      _
    $region23: #{transformer_encoder_forward.10} parent=1 // pred_check_branch
      %65 = sbr.rel (0) target = $region25
    $region24: #{transformer_encoder_forward.10} parent=1 // pred_region
      %67 = vsyncadd [#allocation8], 0
      %s69 = sshll.u32 %s5, 4
      %s70 = int_to_ptr.hbm [resolvable:$true] %s69
      %s71 = sshll.u32 [#allocation9], 4
      %s72 = int_to_ptr.vmem [resolvable:$true] %s71
      %74 = dma.hbm_to_vmem [thread:$0]  %s70, 16, %s72, [#allocation8]
    $region25: #{transformer_encoder_forward.10} parent=1 // pred_fallthru
      _
    // Predicated region
    $region26: #{transformer_encoder_forward.10} parent=1 // pred_check
      _
    $region27: #{transformer_encoder_forward.10} parent=1 // pred_check_branch
      %76 = sbr.rel (0) target = $region29
    $region28: #{transformer_encoder_forward.10} parent=1 // pred_region
      %78 = dma.done [#allocation3], 256
    $region29: #{transformer_encoder_forward.10} parent=1 // pred_fallthru
      _
    // Predicated region
    $region30: #{transformer_encoder_forward.10} parent=1 // pred_check
      _
    $region31: #{transformer_encoder_forward.10} parent=1 // pred_check_branch
      %80 = sbr.rel (0) target = $region33
    $region32: #{transformer_encoder_forward.10} parent=1 // pred_region
      %82 = dma.done [#allocation5], 256
    $region33: #{transformer_encoder_forward.10} parent=1 // pred_fallthru
      _
    // Predicated region
    $region34: #{transformer_encoder_forward.10} parent=1 // pred_check
      _
    $region35: #{transformer_encoder_forward.10} parent=1 // pred_check_branch
      %84 = sbr.rel (0) target = $region37
    $region36: #{transformer_encoder_forward.10} parent=1 // pred_region
      %86 = dma.done [#allocation5], 16
    $region37: #{transformer_encoder_forward.10} parent=1 // pred_fallthru
      _
    // Predicated region
    $region38: #{transformer_encoder_forward.10} parent=1 // pred_check
      _
    $region39: #{transformer_encoder_forward.10} parent=1 // pred_check_branch
      %88 = sbr.rel (0) target = $region41
    $region40: #{transformer_encoder_forward.10} parent=1 // pred_region
      %90 = dma.done [#allocation8], 16
    $region41: #{transformer_encoder_forward.10} parent=1 // pred_fallthru
      _
    // Predicated region
    $region42: #{transformer_encoder_forward.10} parent=1 // pred_check
      _
    $region43: #{transformer_encoder_forward.10} parent=1 // pred_check_branch
      %92 = sbr.rel (0) target = $region45
    $region44: #{transformer_encoder_forward.10} parent=1 // pred_region
      %94 = dma.done [#allocation8], 16
    $region45: #{transformer_encoder_forward.10} parent=1 // pred_fallthru
      _
    %v96 = vld [vmem:[%s0] sm:$0xf]
    %v97 = vld [vmem:[%s0 + $0x4] sm:$0xf]
    %v98 = vld [vmem:[#allocation4] sm:$0xf]
    %v99 = vld [vmem:[#allocation4 + $0x4] sm:$0xf]
    %v100 = vld [vmem:[#allocation4 + $0x8] sm:$0xf]
    %v101 = vld [vmem:[#allocation4 + $0xc] sm:$0xf]
    %v102 = vld [vmem:[#allocation6] sm:$0x1]
    %v104 = vperm.slane %v102, 0
    %v108 = vunpack.c.l.b16 %v96
    %v109 = vunpack.c.l.b16 %v97
    %v110 = vpack.c.b16 %v109, %v108
    %v115 = vunpack.c.l.b16 %v98
    %v116 = vunpack.c.l.b16 %v99
    %v117 = vunpack.c.l.b16 %v100
    %v118 = vunpack.c.l.b16 %v101
    %v119 = vpack.c.b16 %v116, %v115
    %v120 = vpack.c.b16 %v118, %v117
    %vm123 = vcmask 261120
    %v125 = vsel %vm123, %v110, 0
    %127 = vmatpush.bf16.msra.mxu0 0
    %128 = vmatpush.bf16.msra.mxu0 0
    %129 = vmatpush.bf16.msra.mxu0 0
    %130 = vmatpush.bf16.msra.mxu0 0
    %131 = vmatpush.bf16.msra.mxu0 0
    %132 = vmatpush.bf16.msra.mxu0 0
    %133 = vmatpush.bf16.msra.mxu0 %v120
    %134 = vmatpush.bf16.msra.mxu0 %v119
    %135 = vmatmul.bf16.gmra.mxu0 %v125
    %v136 = vpop.f32.mrf.mxu0
    %v137 = vadd.f32 %v104, %v136
    %v138 = vpop.f32.mrf.mxu0
    %v139 = vadd.f32 %v104, %v138
    %140 = vdwg.mxu0
    %v141 = vld [vmem:[#allocation2] sm:$0xff]
    %v142 = vld [vmem:[#allocation2 + $0x8] sm:$0xff]
    %v143 = vadd.f32 %v141, %v137
    %v144 = vadd.f32 %v142, %v139
    %v145 = vsel %vm123, %v143, 0.0
    %146 = vadd.xlane.f32.xlu0 %v145
    %v147 = vpop.xlane.xlu0 %146
    %v148 = vsel %vm123, %v144, 0.0
    %149 = vadd.xlane.f32.xlu0 %v148
    %v150 = vpop.xlane.xlu0 %149
    %v151 = vrcp.pop 32.0
    %v152 = vmul.f32 32.0, %v151
    %v153 = vsub.f32 1.0, %v152
    %v154 = vmul.f32 %v151, %v153
    %v155 = vadd.f32 %v151, %v154
    %vm156 = vweird.f32 %v151
    %v157 = vsel %vm156, %v151, %v155
    %v158 = vmul.f32 %v147, %v157
    %v159 = vmul.f32 %v150, %v157
    %v160 = vsub.f32 %v143, %v158
    %v161 = vsub.f32 %v144, %v159
    %v162 = vmul.f32 %v160, %v160
    %v163 = vmul.f32 %v161, %v161
    %v164 = vsel %vm123, %v162, 0.0
    %165 = vadd.xlane.f32.xlu0 %v164
    %v166 = vpop.xlane.xlu0 %165
    %v167 = vsel %vm123, %v163, 0.0
    %168 = vadd.xlane.f32.xlu0 %v167
    %v169 = vpop.xlane.xlu0 %168
    %v170 = vmul.f32 %v166, %v157
    %v171 = vmul.f32 %v169, %v157
    %v172 = vadd.f32 %v170, 1e-05
    %v173 = vadd.f32 %v171, 1e-05
    %v174 = vrsqrt.pop %v172
    %v175 = vmul.f32 %v174, %v172
    %v176 = vmul.f32 %v175, %v174
    %v177 = vmul.f32 0.5, %v176
    %v178 = vsub.f32 1.5, %v177
    %v179 = vmul.f32 %v174, %v178
    %vm180 = vweird.f32 %v172
    %vm181 = vweird.f32 %v174
    %vm182 = vmor %vm180, %vm181
    %v183 = vsel %vm182, %v174, %v179
    %v184 = vrsqrt.pop %v173
    %v185 = vmul.f32 %v184, %v173
    %v186 = vmul.f32 %v185, %v184
    %v187 = vmul.f32 0.5, %v186
    %v188 = vsub.f32 1.5, %v187
    %v189 = vmul.f32 %v184, %v188
    %vm190 = vweird.f32 %v173
    %vm191 = vweird.f32 %v184
    %vm192 = vmor %vm190, %vm191
    %v193 = vsel %vm192, %v184, %v189
    %v194 = vmul.f32 %v160, %v183
    %v195 = vmul.f32 %v161, %v193
    %v196 = vld [vmem:[#allocation7] sm:$0x1]
    %v198 = vperm.slane %v196, 0
    %v200 = vmul.f32 %v194, %v198
    %v201 = vmul.f32 %v195, %v198
    %v202 = vld [vmem:[#allocation9] sm:$0x1]
    %v204 = vperm.slane %v202, 0
    %v206 = vadd.f32 %v200, %v204
    %v207 = vadd.f32 %v201, %v204
    %208 = vst.msk [vmem:[%s6] sm:$0xff] %vm123, %v206
    %209 = vst.msk [vmem:[%s6 + $0x8] sm:$0xff] %vm123, %v207
    // Predicated region
    $region46: #{transformer_encoder_forward.10} parent=1 // pred_check
      _
    $region47: #{transformer_encoder_forward.10} parent=1 // pred_check_branch
      %211 = sbr.rel (0) target = $region49
    $region48: #{transformer_encoder_forward.10} parent=1 // pred_region
      _
    $region49: #{transformer_encoder_forward.10} parent=1 // pred_fallthru
      _
    // Predicated region
    $region50: #{transformer_encoder_forward.10} parent=1 // pred_check
      _
    $region51: #{transformer_encoder_forward.10} parent=1 // pred_check_branch
      %213 = sbr.rel (0) target = $region53
    $region52: #{transformer_encoder_forward.10} parent=1 // pred_region
      _
    $region53: #{transformer_encoder_forward.10} parent=1 // pred_fallthru
      _
    %214 = vsyncpa [#allocation3], 1
    %215 = vsyncpa [#allocation5], 1
    %216 = vsyncpa [#allocation8], 1

// kernel: transformer_encoder_forward.11
$region0: #{transformer_encoder_forward.11}
  #allocation0 [shape = 'u32[]', space=smem, size = 0x4, offset = 0x4, fixed_abs, tag = 'smem constant byte address 0x4 - core index']
  #allocation1 [shape = 'u32[72,128]{1,0:T(1,128)}', space=vmem, size = 0x9000, scoped, tag = 'internal scratch']
  %s0 = inlined_call_operand.vmem [shape: f32[16,32], index: 0, kind: input, shape index: {}]
  %s1 = inlined_call_operand.vmem [shape: bf16[32,64], index: 1, kind: input, shape index: {}]
  %s2 = inlined_call_operand.hbm [shape: f32[1,64], index: 2, kind: input, shape index: {}]
  %s3 = inlined_call_operand.vmem [shape: bf16[64,32], index: 3, kind: input, shape index: {}]
  %s4 = inlined_call_operand.hbm [shape: f32[1,32], index: 4, kind: input, shape index: {}]
  %s5 = inlined_call_operand.hbm [shape: f32[1,32], index: 5, kind: input, shape index: {}]
  %s6 = inlined_call_operand.hbm [shape: f32[1,32], index: 6, kind: input, shape index: {}]
  %s7 = inlined_call_operand.vmem [shape: f32[16,32], index: 7, kind: output, shape index: {}]
  %s8 = sld [smem:[#allocation0]]
  $region54: #{transformer_encoder_forward.11} parent=0
    _
  %s10 = ssub.s32 1, %s8
  %s11 = scalar_select 0, %s10, %s8
  $region1: #{transformer_encoder_forward.11} parent=0
    #allocation2 [shape = 'u8[512]{0}', space=vmem, size = 0x400, scoped, tag = 'input window, operand 2, single buffered']
    #allocation3 [shape = 's32[1]{0}', space=sflag, size = 0x4, scoped, tag = 'scoped memory for transformer_encoder_forward.11']
    #allocation4 [shape = 'u8[512]{0}', space=vmem, size = 0x400, scoped, tag = 'input window, operand 4, single buffered']
    #allocation5 [shape = 's32[1]{0}', space=sflag, size = 0x4, scoped, tag = 'scoped memory for transformer_encoder_forward.11']
    #allocation6 [shape = 'u8[512]{0}', space=vmem, size = 0x400, scoped, tag = 'input window, operand 5, single buffered']
    #allocation7 [shape = 'u8[512]{0}', space=vmem, size = 0x400, scoped, tag = 'input window, operand 6, single buffered']
    #allocation8 [shape = 's32[1]{0}', space=sflag, size = 0x4, scoped, tag = 'scoped memory for transformer_encoder_forward.11']
    %12 = vsyncpa [#allocation3], 0
    %13 = vsyncpa [#allocation5], 0
    %14 = vsyncpa [#allocation8], 0
    // Predicated region
    $region2: #{transformer_encoder_forward.11} parent=1 // pred_check
      _
    $region3: #{transformer_encoder_forward.11} parent=1 // pred_check_branch
      %16 = sbr.rel (0) target = $region5
    $region4: #{transformer_encoder_forward.11} parent=1 // pred_region
      _
    $region5: #{transformer_encoder_forward.11} parent=1 // pred_fallthru
      _
    // Predicated region
    $region6: #{transformer_encoder_forward.11} parent=1 // pred_check
      _
    $region7: #{transformer_encoder_forward.11} parent=1 // pred_check_branch
      %18 = sbr.rel (0) target = $region9
    $region8: #{transformer_encoder_forward.11} parent=1 // pred_region
      _
    $region9: #{transformer_encoder_forward.11} parent=1 // pred_fallthru
      _
    // Predicated region
    $region10: #{transformer_encoder_forward.11} parent=1 // pred_check
      _
    $region11: #{transformer_encoder_forward.11} parent=1 // pred_check_branch
      %20 = sbr.rel (0) target = $region13
    $region12: #{transformer_encoder_forward.11} parent=1 // pred_region
      %22 = vsyncadd [#allocation3], 0
      %s24 = sshll.u32 %s2, 4
      %s25 = int_to_ptr.hbm [resolvable:$true] %s24
      %s26 = sshll.u32 [#allocation2], 4
      %s27 = int_to_ptr.vmem [resolvable:$true] %s26
      %29 = dma.hbm_to_vmem [thread:$0]  %s25, 16, %s27, [#allocation3]
    $region13: #{transformer_encoder_forward.11} parent=1 // pred_fallthru
      _
    // Predicated region
    $region14: #{transformer_encoder_forward.11} parent=1 // pred_check
      _
    $region15: #{transformer_encoder_forward.11} parent=1 // pred_check_branch
      %31 = sbr.rel (0) target = $region17
    $region16: #{transformer_encoder_forward.11} parent=1 // pred_region
      _
    $region17: #{transformer_encoder_forward.11} parent=1 // pred_fallthru
      _
    // Predicated region
    $region18: #{transformer_encoder_forward.11} parent=1 // pred_check
      _
    $region19: #{transformer_encoder_forward.11} parent=1 // pred_check_branch
      %33 = sbr.rel (0) target = $region21
    $region20: #{transformer_encoder_forward.11} parent=1 // pred_region
      %35 = vsyncadd [#allocation5], 0
      %s37 = sshll.u32 %s4, 4
      %s38 = int_to_ptr.hbm [resolvable:$true] %s37
      %s39 = sshll.u32 [#allocation4], 4
      %s40 = int_to_ptr.vmem [resolvable:$true] %s39
      %42 = dma.hbm_to_vmem [thread:$0]  %s38, 16, %s40, [#allocation5]
    $region21: #{transformer_encoder_forward.11} parent=1 // pred_fallthru
      _
    // Predicated region
    $region22: #{transformer_encoder_forward.11} parent=1 // pred_check
      _
    $region23: #{transformer_encoder_forward.11} parent=1 // pred_check_branch
      %44 = sbr.rel (0) target = $region25
    $region24: #{transformer_encoder_forward.11} parent=1 // pred_region
      %46 = vsyncadd [#allocation5], 0
      %s48 = sshll.u32 %s5, 4
      %s49 = int_to_ptr.hbm [resolvable:$true] %s48
      %s50 = sshll.u32 [#allocation6], 4
      %s51 = int_to_ptr.vmem [resolvable:$true] %s50
      %53 = dma.hbm_to_vmem [thread:$0]  %s49, 16, %s51, [#allocation5]
    $region25: #{transformer_encoder_forward.11} parent=1 // pred_fallthru
      _
    // Predicated region
    $region26: #{transformer_encoder_forward.11} parent=1 // pred_check
      _
    $region27: #{transformer_encoder_forward.11} parent=1 // pred_check_branch
      %55 = sbr.rel (0) target = $region29
    $region28: #{transformer_encoder_forward.11} parent=1 // pred_region
      %57 = vsyncadd [#allocation8], 0
      %s59 = sshll.u32 %s6, 4
      %s60 = int_to_ptr.hbm [resolvable:$true] %s59
      %s61 = sshll.u32 [#allocation7], 4
      %s62 = int_to_ptr.vmem [resolvable:$true] %s61
      %64 = dma.hbm_to_vmem [thread:$0]  %s60, 16, %s62, [#allocation8]
    $region29: #{transformer_encoder_forward.11} parent=1 // pred_fallthru
      _
    // Predicated region
    $region30: #{transformer_encoder_forward.11} parent=1 // pred_check
      _
    $region31: #{transformer_encoder_forward.11} parent=1 // pred_check_branch
      %66 = sbr.rel (0) target = $region33
    $region32: #{transformer_encoder_forward.11} parent=1 // pred_region
      %68 = dma.done [#allocation3], 16
    $region33: #{transformer_encoder_forward.11} parent=1 // pred_fallthru
      _
    // Predicated region
    $region34: #{transformer_encoder_forward.11} parent=1 // pred_check
      _
    $region35: #{transformer_encoder_forward.11} parent=1 // pred_check_branch
      %70 = sbr.rel (0) target = $region37
    $region36: #{transformer_encoder_forward.11} parent=1 // pred_region
      %72 = dma.done [#allocation5], 16
    $region37: #{transformer_encoder_forward.11} parent=1 // pred_fallthru
      _
    // Predicated region
    $region38: #{transformer_encoder_forward.11} parent=1 // pred_check
      _
    $region39: #{transformer_encoder_forward.11} parent=1 // pred_check_branch
      %74 = sbr.rel (0) target = $region41
    $region40: #{transformer_encoder_forward.11} parent=1 // pred_region
      %76 = dma.done [#allocation5], 16
    $region41: #{transformer_encoder_forward.11} parent=1 // pred_fallthru
      _
    // Predicated region
    $region42: #{transformer_encoder_forward.11} parent=1 // pred_check
      _
    $region43: #{transformer_encoder_forward.11} parent=1 // pred_check_branch
      %78 = sbr.rel (0) target = $region45
    $region44: #{transformer_encoder_forward.11} parent=1 // pred_region
      %80 = dma.done [#allocation8], 16
    $region45: #{transformer_encoder_forward.11} parent=1 // pred_fallthru
      _
    %v82 = vld [vmem:[%s0] sm:$0xff]
    %v83 = vld [vmem:[%s0 + $0x8] sm:$0xff]
    %v84 = vpack.c.bf16 %v83, %v82
    %v85 = vld [vmem:[%s1] sm:$0xf]
    %v86 = vld [vmem:[%s1 + $0x4] sm:$0xf]
    %v87 = vld [vmem:[%s1 + $0x8] sm:$0xf]
    %v88 = vld [vmem:[%s1 + $0xc] sm:$0xf]
    %v89 = vld [vmem:[#allocation2] sm:$0x1]
    %v91 = vperm.slane %v89, 0
    %v97 = vunpack.c.l.b16 %v85
    %v98 = vunpack.c.l.b16 %v86
    %v99 = vunpack.c.l.b16 %v87
    %v100 = vunpack.c.l.b16 %v88
    %v101 = vpack.c.b16 %v98, %v97
    %v102 = vpack.c.b16 %v100, %v99
    %vm105 = vcmask 261120
    %v107 = vsel %vm105, %v84, 0
    %109 = vmatpush.bf16.msra.mxu0 0
    %110 = vmatpush.bf16.msra.mxu0 0
    %111 = vmatpush.bf16.msra.mxu0 0
    %112 = vmatpush.bf16.msra.mxu0 0
    %113 = vmatpush.bf16.msra.mxu0 0
    %114 = vmatpush.bf16.msra.mxu0 0
    %115 = vmatpush.bf16.msra.mxu0 %v102
    %116 = vmatpush.bf16.msra.mxu0 %v101
    %117 = vmatmul.bf16.gmra.mxu0 %v107
    %v118 = vpop.f32.mrf.mxu0
    %v119 = vadd.f32 %v91, %v118
    %v120 = vpop.f32.mrf.mxu0
    %v121 = vadd.f32 %v91, %v120
    %122 = vdwg.mxu0
    %v123 = vmax.f32 %v119, 0.0
    %v124 = vmax.f32 %v121, 0.0
    %v125 = vpack.c.bf16 %v124, %v123
    %v126 = vld [vmem:[%s3] sm:$0xf]
    %v127 = vld [vmem:[%s3 + $0x4] sm:$0xf]
    %v128 = vld [vmem:[%s3 + $0x8] sm:$0xf]
    %v129 = vld [vmem:[%s3 + $0xc] sm:$0xf]
    %v130 = vld [vmem:[%s3 + $0x10] sm:$0xf]
    %v131 = vld [vmem:[%s3 + $0x14] sm:$0xf]
    %v132 = vld [vmem:[%s3 + $0x18] sm:$0xf]
    %v133 = vld [vmem:[%s3 + $0x1c] sm:$0xf]
    %v134 = vld [vmem:[#allocation4] sm:$0x1]
    %v136 = vperm.slane %v134, 0
    %v146 = vunpack.c.l.b16 %v126
    %v147 = vunpack.c.l.b16 %v127
    %v148 = vunpack.c.l.b16 %v128
    %v149 = vunpack.c.l.b16 %v129
    %v150 = vunpack.c.l.b16 %v130
    %v151 = vunpack.c.l.b16 %v131
    %v152 = vunpack.c.l.b16 %v132
    %v153 = vunpack.c.l.b16 %v133
    %v154 = vpack.c.b16 %v147, %v146
    %v155 = vpack.c.b16 %v149, %v148
    %v156 = vpack.c.b16 %v151, %v150
    %v157 = vpack.c.b16 %v153, %v152
    %vm162 = vcmask 523264
    %v164 = vsel %vm162, %v125, 0
    %166 = vmatpush.bf16.msra.mxu0 0
    %167 = vmatpush.bf16.msra.mxu0 0
    %168 = vmatpush.bf16.msra.mxu0 0
    %169 = vmatpush.bf16.msra.mxu0 0
    %170 = vmatpush.bf16.msra.mxu0 %v157
    %171 = vmatpush.bf16.msra.mxu0 %v156
    %172 = vmatpush.bf16.msra.mxu0 %v155
    %173 = vmatpush.bf16.msra.mxu0 %v154
    %174 = vmatmul.bf16.gmra.mxu0 %v164
    %v175 = vpop.f32.mrf.mxu0
    %v176 = vadd.f32 %v136, %v175
    %v177 = vpop.f32.mrf.mxu0
    %v178 = vadd.f32 %v136, %v177
    %179 = vdwg.mxu0
    %v180 = vadd.f32 %v82, %v176
    %v181 = vadd.f32 %v83, %v178
    %v182 = vsel %vm105, %v180, 0.0
    %183 = vadd.xlane.f32.xlu0 %v182
    %v184 = vpop.xlane.xlu0 %183
    %v185 = vsel %vm105, %v181, 0.0
    %186 = vadd.xlane.f32.xlu0 %v185
    %v187 = vpop.xlane.xlu0 %186
    %v188 = vrcp.pop 32.0
    %v189 = vmul.f32 32.0, %v188
    %v190 = vsub.f32 1.0, %v189
    %v191 = vmul.f32 %v188, %v190
    %v192 = vadd.f32 %v188, %v191
    %vm193 = vweird.f32 %v188
    %v194 = vsel %vm193, %v188, %v192
    %v195 = vmul.f32 %v184, %v194
    %v196 = vmul.f32 %v187, %v194
    %v197 = vsub.f32 %v180, %v195
    %v198 = vsub.f32 %v181, %v196
    %v199 = vmul.f32 %v197, %v197
    %v200 = vmul.f32 %v198, %v198
    %v201 = vsel %vm105, %v199, 0.0
    %202 = vadd.xlane.f32.xlu0 %v201
    %v203 = vpop.xlane.xlu0 %202
    %v204 = vsel %vm105, %v200, 0.0
    %205 = vadd.xlane.f32.xlu0 %v204
    %v206 = vpop.xlane.xlu0 %205
    %v207 = vmul.f32 %v203, %v194
    %v208 = vmul.f32 %v206, %v194
    %v209 = vadd.f32 %v207, 1e-05
    %v210 = vadd.f32 %v208, 1e-05
    %v211 = vrsqrt.pop %v209
    %v212 = vmul.f32 %v211, %v209
    %v213 = vmul.f32 %v212, %v211
    %v214 = vmul.f32 0.5, %v213
    %v215 = vsub.f32 1.5, %v214
    %v216 = vmul.f32 %v211, %v215
    %vm217 = vweird.f32 %v209
    %vm218 = vweird.f32 %v211
    %vm219 = vmor %vm217, %vm218
    %v220 = vsel %vm219, %v211, %v216
    %v221 = vrsqrt.pop %v210
    %v222 = vmul.f32 %v221, %v210
    %v223 = vmul.f32 %v222, %v221
    %v224 = vmul.f32 0.5, %v223
    %v225 = vsub.f32 1.5, %v224
    %v226 = vmul.f32 %v221, %v225
    %vm227 = vweird.f32 %v210
    %vm228 = vweird.f32 %v221
    %vm229 = vmor %vm227, %vm228
    %v230 = vsel %vm229, %v221, %v226
    %v231 = vmul.f32 %v197, %v220
    %v232 = vmul.f32 %v198, %v230
    %v233 = vld [vmem:[#allocation6] sm:$0x1]
    %v235 = vperm.slane %v233, 0
    %v237 = vmul.f32 %v231, %v235
    %v238 = vmul.f32 %v232, %v235
    %v239 = vld [vmem:[#allocation7] sm:$0x1]
    %v241 = vperm.slane %v239, 0
    %v243 = vadd.f32 %v237, %v241
    %v244 = vadd.f32 %v238, %v241
    %245 = vst.msk [vmem:[%s7] sm:$0xff] %vm105, %v243
    %246 = vst.msk [vmem:[%s7 + $0x8] sm:$0xff] %vm105, %v244
    // Predicated region
    $region46: #{transformer_encoder_forward.11} parent=1 // pred_check
      _
    $region47: #{transformer_encoder_forward.11} parent=1 // pred_check_branch
      %248 = sbr.rel (0) target = $region49
    $region48: #{transformer_encoder_forward.11} parent=1 // pred_region
      _
    $region49: #{transformer_encoder_forward.11} parent=1 // pred_fallthru
      _
    // Predicated region
    $region50: #{transformer_encoder_forward.11} parent=1 // pred_check
      _
    $region51: #{transformer_encoder_forward.11} parent=1 // pred_check_branch
      %250 = sbr.rel (0) target = $region53
    $region52: #{transformer_encoder_forward.11} parent=1 // pred_region
      _
    $region53: #{transformer_encoder_forward.11} parent=1 // pred_fallthru
      _
    %251 = vsyncpa [#allocation3], 1
    %252 = vsyncpa [#allocation5], 1
    %253 = vsyncpa [#allocation8], 1

// kernel: transformer_encoder_forward.12
$region0: #{transformer_encoder_forward.12}
  #allocation0 [shape = 'u32[]', space=smem, size = 0x4, offset = 0x4, fixed_abs, tag = 'smem constant byte address 0x4 - core index']
  #allocation1 [shape = 'u32[72,128]{1,0:T(1,128)}', space=vmem, size = 0x9000, scoped, tag = 'internal scratch']
  %s0 = inlined_call_operand.vmem [shape: f32[16,32], index: 0, kind: input, shape index: {}]
  %s1 = inlined_call_operand.vmem [shape: bf16[32,96], index: 1, kind: input, shape index: {}]
  %s2 = inlined_call_operand.vmem [shape: f32[1,96], index: 2, kind: input, shape index: {}]
  %s3 = inlined_call_operand.vmem [shape: bf16[16,96], index: 3, kind: output, shape index: {}]
  %s4 = sld [smem:[#allocation0]]
  $region22: #{transformer_encoder_forward.12} parent=0
    _
  %s6 = ssub.s32 1, %s4
  %s7 = scalar_select 0, %s6, %s4
  // Predicated region
  $region2: #{transformer_encoder_forward.12} parent=0 // pred_check
    _
  $region3: #{transformer_encoder_forward.12} parent=0 // pred_check_branch
    %9 = sbr.rel (0) target = $region5
  $region4: #{transformer_encoder_forward.12} parent=0 // pred_region
    _
  $region5: #{transformer_encoder_forward.12} parent=0 // pred_fallthru
    _
  // Predicated region
  $region6: #{transformer_encoder_forward.12} parent=0 // pred_check
    _
  $region7: #{transformer_encoder_forward.12} parent=0 // pred_check_branch
    %11 = sbr.rel (0) target = $region9
  $region8: #{transformer_encoder_forward.12} parent=0 // pred_region
    _
  $region9: #{transformer_encoder_forward.12} parent=0 // pred_fallthru
    _
  // Predicated region
  $region10: #{transformer_encoder_forward.12} parent=0 // pred_check
    _
  $region11: #{transformer_encoder_forward.12} parent=0 // pred_check_branch
    %13 = sbr.rel (0) target = $region13
  $region12: #{transformer_encoder_forward.12} parent=0 // pred_region
    _
  $region13: #{transformer_encoder_forward.12} parent=0 // pred_fallthru
    _
  %v15 = vld [vmem:[%s0] sm:$0xff]
  %v16 = vld [vmem:[%s0 + $0x8] sm:$0xff]
  %v17 = vpack.c.bf16 %v16, %v15
  %v18 = vld [vmem:[%s1] sm:$0xf]
  %v19 = vld [vmem:[%s1 + $0x4] sm:$0xf]
  %v20 = vld [vmem:[%s1 + $0x8] sm:$0xf]
  %v21 = vld [vmem:[%s1 + $0xc] sm:$0xf]
  %v22 = vld [vmem:[%s2] sm:$0x1]
  %v24 = vperm.slane %v22, 0
  %v30 = vunpack.c.l.b16 %v18
  %v31 = vunpack.c.l.b16 %v19
  %v32 = vunpack.c.l.b16 %v20
  %v33 = vunpack.c.l.b16 %v21
  %v34 = vpack.c.b16 %v31, %v30
  %v35 = vpack.c.b16 %v33, %v32
  %vm38 = vcmask 261120
  %v40 = vsel %vm38, %v17, 0
  %42 = vmatpush.bf16.msra.mxu0 0
  %43 = vmatpush.bf16.msra.mxu0 0
  %44 = vmatpush.bf16.msra.mxu0 0
  %45 = vmatpush.bf16.msra.mxu0 0
  %46 = vmatpush.bf16.msra.mxu0 0
  %47 = vmatpush.bf16.msra.mxu0 0
  %48 = vmatpush.bf16.msra.mxu0 %v35
  %49 = vmatpush.bf16.msra.mxu0 %v34
  %50 = vmatmul.bf16.gmra.mxu0 %v40
  %v51 = vpop.f32.mrf.mxu0
  %v52 = vadd.f32 %v24, %v51
  %v53 = vpop.f32.mrf.mxu0
  %v54 = vadd.f32 %v24, %v53
  %55 = vdwg.mxu0
  %v56 = vpack.c.bf16 %v52, %v52
  %v57 = vpack.c.bf16 %v54, %v54
  %vm58 = vcmask 781312
  %59 = vst.msk [vmem:[%s3] sm:$0xf] %vm58, %v56
  %60 = vst.msk [vmem:[%s3 + $0x4] sm:$0xf] %vm58, %v57
  // Predicated region
  $region14: #{transformer_encoder_forward.12} parent=0 // pred_check
    _
  $region15: #{transformer_encoder_forward.12} parent=0 // pred_check_branch
    %62 = sbr.rel (0) target = $region17
  $region16: #{transformer_encoder_forward.12} parent=0 // pred_region
    _
  $region17: #{transformer_encoder_forward.12} parent=0 // pred_fallthru
    _
  // Predicated region
  $region18: #{transformer_encoder_forward.12} parent=0 // pred_check
    _
  $region19: #{transformer_encoder_forward.12} parent=0 // pred_check_branch
    %64 = sbr.rel (0) target = $region21
  $region20: #{transformer_encoder_forward.12} parent=0 // pred_region
    _
  $region21: #{transformer_encoder_forward.12} parent=0 // pred_fallthru
    _

// kernel: transformer_encoder_forward.14
$region0: #{transformer_encoder_forward.14}
  #allocation0 [shape = 'u32[]', space=smem, size = 0x4, offset = 0x4, fixed_abs, tag = 'smem constant byte address 0x4 - core index']
  #allocation1 [shape = 'u32[72,128]{1,0:T(1,128)}', space=vmem, size = 0x9000, scoped, tag = 'internal scratch']
  %s0 = inlined_call_operand.vmem [shape: bf16[16,32], index: 0, kind: input, shape index: {}]
  %s1 = inlined_call_operand.vmem [shape: f32[16,32], index: 1, kind: input, shape index: {}]
  %s2 = inlined_call_operand.vmem [shape: bf16[32,32], index: 2, kind: input, shape index: {}]
  %s3 = inlined_call_operand.vmem [shape: f32[1,32], index: 3, kind: input, shape index: {}]
  %s4 = inlined_call_operand.vmem [shape: f32[1,32], index: 4, kind: input, shape index: {}]
  %s5 = inlined_call_operand.vmem [shape: f32[1,32], index: 5, kind: input, shape index: {}]
  %s6 = inlined_call_operand.vmem [shape: f32[16,32], index: 6, kind: output, shape index: {}]
  %s7 = sld [smem:[#allocation0]]
  $region34: #{transformer_encoder_forward.14} parent=0
    _
  %s9 = ssub.s32 1, %s7
  %s10 = scalar_select 0, %s9, %s7
  // Predicated region
  $region2: #{transformer_encoder_forward.14} parent=0 // pred_check
    _
  $region3: #{transformer_encoder_forward.14} parent=0 // pred_check_branch
    %12 = sbr.rel (0) target = $region5
  $region4: #{transformer_encoder_forward.14} parent=0 // pred_region
    _
  $region5: #{transformer_encoder_forward.14} parent=0 // pred_fallthru
    _
  // Predicated region
  $region6: #{transformer_encoder_forward.14} parent=0 // pred_check
    _
  $region7: #{transformer_encoder_forward.14} parent=0 // pred_check_branch
    %14 = sbr.rel (0) target = $region9
  $region8: #{transformer_encoder_forward.14} parent=0 // pred_region
    _
  $region9: #{transformer_encoder_forward.14} parent=0 // pred_fallthru
    _
  // Predicated region
  $region10: #{transformer_encoder_forward.14} parent=0 // pred_check
    _
  $region11: #{transformer_encoder_forward.14} parent=0 // pred_check_branch
    %16 = sbr.rel (0) target = $region13
  $region12: #{transformer_encoder_forward.14} parent=0 // pred_region
    _
  $region13: #{transformer_encoder_forward.14} parent=0 // pred_fallthru
    _
  // Predicated region
  $region14: #{transformer_encoder_forward.14} parent=0 // pred_check
    _
  $region15: #{transformer_encoder_forward.14} parent=0 // pred_check_branch
    %18 = sbr.rel (0) target = $region17
  $region16: #{transformer_encoder_forward.14} parent=0 // pred_region
    _
  $region17: #{transformer_encoder_forward.14} parent=0 // pred_fallthru
    _
  // Predicated region
  $region18: #{transformer_encoder_forward.14} parent=0 // pred_check
    _
  $region19: #{transformer_encoder_forward.14} parent=0 // pred_check_branch
    %20 = sbr.rel (0) target = $region21
  $region20: #{transformer_encoder_forward.14} parent=0 // pred_region
    _
  $region21: #{transformer_encoder_forward.14} parent=0 // pred_fallthru
    _
  // Predicated region
  $region22: #{transformer_encoder_forward.14} parent=0 // pred_check
    _
  $region23: #{transformer_encoder_forward.14} parent=0 // pred_check_branch
    %22 = sbr.rel (0) target = $region25
  $region24: #{transformer_encoder_forward.14} parent=0 // pred_region
    _
  $region25: #{transformer_encoder_forward.14} parent=0 // pred_fallthru
    _
  %v24 = vld [vmem:[%s0] sm:$0xf]
  %v25 = vld [vmem:[%s0 + $0x4] sm:$0xf]
  %v26 = vld [vmem:[%s2] sm:$0xf]
  %v27 = vld [vmem:[%s2 + $0x4] sm:$0xf]
  %v28 = vld [vmem:[%s2 + $0x8] sm:$0xf]
  %v29 = vld [vmem:[%s2 + $0xc] sm:$0xf]
  %v30 = vld [vmem:[%s3] sm:$0x1]
  %v32 = vperm.slane %v30, 0
  %v36 = vunpack.c.l.b16 %v24
  %v37 = vunpack.c.l.b16 %v25
  %v38 = vpack.c.b16 %v37, %v36
  %v43 = vunpack.c.l.b16 %v26
  %v44 = vunpack.c.l.b16 %v27
  %v45 = vunpack.c.l.b16 %v28
  %v46 = vunpack.c.l.b16 %v29
  %v47 = vpack.c.b16 %v44, %v43
  %v48 = vpack.c.b16 %v46, %v45
  %vm51 = vcmask 261120
  %v53 = vsel %vm51, %v38, 0
  %55 = vmatpush.bf16.msra.mxu0 0
  %56 = vmatpush.bf16.msra.mxu0 0
  %57 = vmatpush.bf16.msra.mxu0 0
  %58 = vmatpush.bf16.msra.mxu0 0
  %59 = vmatpush.bf16.msra.mxu0 0
  %60 = vmatpush.bf16.msra.mxu0 0
  %61 = vmatpush.bf16.msra.mxu0 %v48
  %62 = vmatpush.bf16.msra.mxu0 %v47
  %63 = vmatmul.bf16.gmra.mxu0 %v53
  %v64 = vpop.f32.mrf.mxu0
  %v65 = vadd.f32 %v32, %v64
  %v66 = vpop.f32.mrf.mxu0
  %v67 = vadd.f32 %v32, %v66
  %68 = vdwg.mxu0
  %v69 = vld [vmem:[%s1] sm:$0xff]
  %v70 = vld [vmem:[%s1 + $0x8] sm:$0xff]
  %v71 = vadd.f32 %v69, %v65
  %v72 = vadd.f32 %v70, %v67
  %v73 = vsel %vm51, %v71, 0.0
  %74 = vadd.xlane.f32.xlu0 %v73
  %v75 = vpop.xlane.xlu0 %74
  %v76 = vsel %vm51, %v72, 0.0
  %77 = vadd.xlane.f32.xlu0 %v76
  %v78 = vpop.xlane.xlu0 %77
  %v79 = vrcp.pop 32.0
  %v80 = vmul.f32 32.0, %v79
  %v81 = vsub.f32 1.0, %v80
  %v82 = vmul.f32 %v79, %v81
  %v83 = vadd.f32 %v79, %v82
  %vm84 = vweird.f32 %v79
  %v85 = vsel %vm84, %v79, %v83
  %v86 = vmul.f32 %v75, %v85
  %v87 = vmul.f32 %v78, %v85
  %v88 = vsub.f32 %v71, %v86
  %v89 = vsub.f32 %v72, %v87
  %v90 = vmul.f32 %v88, %v88
  %v91 = vmul.f32 %v89, %v89
  %v92 = vsel %vm51, %v90, 0.0
  %93 = vadd.xlane.f32.xlu0 %v92
  %v94 = vpop.xlane.xlu0 %93
  %v95 = vsel %vm51, %v91, 0.0
  %96 = vadd.xlane.f32.xlu0 %v95
  %v97 = vpop.xlane.xlu0 %96
  %v98 = vmul.f32 %v94, %v85
  %v99 = vmul.f32 %v97, %v85
  %v100 = vadd.f32 %v98, 1e-05
  %v101 = vadd.f32 %v99, 1e-05
  %v102 = vrsqrt.pop %v100
  %v103 = vmul.f32 %v102, %v100
  %v104 = vmul.f32 %v103, %v102
  %v105 = vmul.f32 0.5, %v104
  %v106 = vsub.f32 1.5, %v105
  %v107 = vmul.f32 %v102, %v106
  %vm108 = vweird.f32 %v100
  %vm109 = vweird.f32 %v102
  %vm110 = vmor %vm108, %vm109
  %v111 = vsel %vm110, %v102, %v107
  %v112 = vrsqrt.pop %v101
  %v113 = vmul.f32 %v112, %v101
  %v114 = vmul.f32 %v113, %v112
  %v115 = vmul.f32 0.5, %v114
  %v116 = vsub.f32 1.5, %v115
  %v117 = vmul.f32 %v112, %v116
  %vm118 = vweird.f32 %v101
  %vm119 = vweird.f32 %v112
  %vm120 = vmor %vm118, %vm119
  %v121 = vsel %vm120, %v112, %v117
  %v122 = vmul.f32 %v88, %v111
  %v123 = vmul.f32 %v89, %v121
  %v124 = vld [vmem:[%s4] sm:$0x1]
  %v126 = vperm.slane %v124, 0
  %v128 = vmul.f32 %v122, %v126
  %v129 = vmul.f32 %v123, %v126
  %v130 = vld [vmem:[%s5] sm:$0x1]
  %v132 = vperm.slane %v130, 0
  %v134 = vadd.f32 %v128, %v132
  %v135 = vadd.f32 %v129, %v132
  %136 = vst.msk [vmem:[%s6] sm:$0xff] %vm51, %v134
  %137 = vst.msk [vmem:[%s6 + $0x8] sm:$0xff] %vm51, %v135
  // Predicated region
  $region26: #{transformer_encoder_forward.14} parent=0 // pred_check
    _
  $region27: #{transformer_encoder_forward.14} parent=0 // pred_check_branch
    %139 = sbr.rel (0) target = $region29
  $region28: #{transformer_encoder_forward.14} parent=0 // pred_region
    _
  $region29: #{transformer_encoder_forward.14} parent=0 // pred_fallthru
    _
  // Predicated region
  $region30: #{transformer_encoder_forward.14} parent=0 // pred_check
    _
  $region31: #{transformer_encoder_forward.14} parent=0 // pred_check_branch
    %141 = sbr.rel (0) target = $region33
  $region32: #{transformer_encoder_forward.14} parent=0 // pred_region
    _
  $region33: #{transformer_encoder_forward.14} parent=0 // pred_fallthru
    _

// kernel: transformer_encoder_forward.15
$region0: #{transformer_encoder_forward.15}
  #allocation0 [shape = 'u32[]', space=smem, size = 0x4, offset = 0x4, fixed_abs, tag = 'smem constant byte address 0x4 - core index']
  #allocation1 [shape = 'u32[72,128]{1,0:T(1,128)}', space=vmem, size = 0x9000, scoped, tag = 'internal scratch']
  %s0 = inlined_call_operand.vmem [shape: f32[16,32], index: 0, kind: input, shape index: {}]
  %s1 = inlined_call_operand.vmem [shape: bf16[32,64], index: 1, kind: input, shape index: {}]
  %s2 = inlined_call_operand.vmem [shape: f32[1,64], index: 2, kind: input, shape index: {}]
  %s3 = inlined_call_operand.vmem [shape: bf16[64,32], index: 3, kind: input, shape index: {}]
  %s4 = inlined_call_operand.vmem [shape: f32[1,32], index: 4, kind: input, shape index: {}]
  %s5 = inlined_call_operand.vmem [shape: f32[1,32], index: 5, kind: input, shape index: {}]
  %s6 = inlined_call_operand.vmem [shape: f32[1,32], index: 6, kind: input, shape index: {}]
  %s7 = inlined_call_operand.hbm [shape: f32[16,32], index: 7, kind: output, shape index: {}]
  %s8 = sld [smem:[#allocation0]]
  $region38: #{transformer_encoder_forward.15} parent=0
    _
  %s10 = ssub.s32 1, %s8
  %s11 = scalar_select 0, %s10, %s8
  $region1: #{transformer_encoder_forward.15} parent=0
    #allocation2 [shape = 'u8[8192]{0}', space=vmem, size = 0x2000, scoped, tag = 'output window, operand 0, single buffered']
    #allocation3 [shape = 's32[1]{0}', space=sflag, size = 0x4, scoped, tag = 'scoped memory for transformer_encoder_forward.15']
    %12 = vsyncpa [#allocation3], 0
    // Predicated region
    $region2: #{transformer_encoder_forward.15} parent=1 // pred_check
      _
    $region3: #{transformer_encoder_forward.15} parent=1 // pred_check_branch
      %14 = sbr.rel (0) target = $region5
    $region4: #{transformer_encoder_forward.15} parent=1 // pred_region
      _
    $region5: #{transformer_encoder_forward.15} parent=1 // pred_fallthru
      _
    // Predicated region
    $region6: #{transformer_encoder_forward.15} parent=1 // pred_check
      _
    $region7: #{transformer_encoder_forward.15} parent=1 // pred_check_branch
      %16 = sbr.rel (0) target = $region9
    $region8: #{transformer_encoder_forward.15} parent=1 // pred_region
      _
    $region9: #{transformer_encoder_forward.15} parent=1 // pred_fallthru
      _
    // Predicated region
    $region10: #{transformer_encoder_forward.15} parent=1 // pred_check
      _
    $region11: #{transformer_encoder_forward.15} parent=1 // pred_check_branch
      %18 = sbr.rel (0) target = $region13
    $region12: #{transformer_encoder_forward.15} parent=1 // pred_region
      _
    $region13: #{transformer_encoder_forward.15} parent=1 // pred_fallthru
      _
    // Predicated region
    $region14: #{transformer_encoder_forward.15} parent=1 // pred_check
      _
    $region15: #{transformer_encoder_forward.15} parent=1 // pred_check_branch
      %20 = sbr.rel (0) target = $region17
    $region16: #{transformer_encoder_forward.15} parent=1 // pred_region
      _
    $region17: #{transformer_encoder_forward.15} parent=1 // pred_fallthru
      _
    // Predicated region
    $region18: #{transformer_encoder_forward.15} parent=1 // pred_check
      _
    $region19: #{transformer_encoder_forward.15} parent=1 // pred_check_branch
      %22 = sbr.rel (0) target = $region21
    $region20: #{transformer_encoder_forward.15} parent=1 // pred_region
      _
    $region21: #{transformer_encoder_forward.15} parent=1 // pred_fallthru
      _
    // Predicated region
    $region22: #{transformer_encoder_forward.15} parent=1 // pred_check
      _
    $region23: #{transformer_encoder_forward.15} parent=1 // pred_check_branch
      %24 = sbr.rel (0) target = $region25
    $region24: #{transformer_encoder_forward.15} parent=1 // pred_region
      _
    $region25: #{transformer_encoder_forward.15} parent=1 // pred_fallthru
      _
    // Predicated region
    $region26: #{transformer_encoder_forward.15} parent=1 // pred_check
      _
    $region27: #{transformer_encoder_forward.15} parent=1 // pred_check_branch
      %26 = sbr.rel (0) target = $region29
    $region28: #{transformer_encoder_forward.15} parent=1 // pred_region
      _
    $region29: #{transformer_encoder_forward.15} parent=1 // pred_fallthru
      _
    %v28 = vld [vmem:[%s0] sm:$0xff]
    %v29 = vld [vmem:[%s0 + $0x8] sm:$0xff]
    %v30 = vpack.c.bf16 %v29, %v28
    %v31 = vld [vmem:[%s1] sm:$0xf]
    %v32 = vld [vmem:[%s1 + $0x4] sm:$0xf]
    %v33 = vld [vmem:[%s1 + $0x8] sm:$0xf]
    %v34 = vld [vmem:[%s1 + $0xc] sm:$0xf]
    %v35 = vld [vmem:[%s2] sm:$0x1]
    %v37 = vperm.slane %v35, 0
    %v43 = vunpack.c.l.b16 %v31
    %v44 = vunpack.c.l.b16 %v32
    %v45 = vunpack.c.l.b16 %v33
    %v46 = vunpack.c.l.b16 %v34
    %v47 = vpack.c.b16 %v44, %v43
    %v48 = vpack.c.b16 %v46, %v45
    %vm51 = vcmask 261120
    %v53 = vsel %vm51, %v30, 0
    %55 = vmatpush.bf16.msra.mxu0 0
    %56 = vmatpush.bf16.msra.mxu0 0
    %57 = vmatpush.bf16.msra.mxu0 0
    %58 = vmatpush.bf16.msra.mxu0 0
    %59 = vmatpush.bf16.msra.mxu0 0
    %60 = vmatpush.bf16.msra.mxu0 0
    %61 = vmatpush.bf16.msra.mxu0 %v48
    %62 = vmatpush.bf16.msra.mxu0 %v47
    %63 = vmatmul.bf16.gmra.mxu0 %v53
    %v64 = vpop.f32.mrf.mxu0
    %v65 = vadd.f32 %v37, %v64
    %v66 = vpop.f32.mrf.mxu0
    %v67 = vadd.f32 %v37, %v66
    %68 = vdwg.mxu0
    %v69 = vmax.f32 %v65, 0.0
    %v70 = vmax.f32 %v67, 0.0
    %v71 = vpack.c.bf16 %v70, %v69
    %v72 = vld [vmem:[%s3] sm:$0xf]
    %v73 = vld [vmem:[%s3 + $0x4] sm:$0xf]
    %v74 = vld [vmem:[%s3 + $0x8] sm:$0xf]
    %v75 = vld [vmem:[%s3 + $0xc] sm:$0xf]
    %v76 = vld [vmem:[%s3 + $0x10] sm:$0xf]
    %v77 = vld [vmem:[%s3 + $0x14] sm:$0xf]
    %v78 = vld [vmem:[%s3 + $0x18] sm:$0xf]
    %v79 = vld [vmem:[%s3 + $0x1c] sm:$0xf]
    %v80 = vld [vmem:[%s4] sm:$0x1]
    %v82 = vperm.slane %v80, 0
    %v92 = vunpack.c.l.b16 %v72
    %v93 = vunpack.c.l.b16 %v73
    %v94 = vunpack.c.l.b16 %v74
    %v95 = vunpack.c.l.b16 %v75
    %v96 = vunpack.c.l.b16 %v76
    %v97 = vunpack.c.l.b16 %v77
    %v98 = vunpack.c.l.b16 %v78
    %v99 = vunpack.c.l.b16 %v79
    %v100 = vpack.c.b16 %v93, %v92
    %v101 = vpack.c.b16 %v95, %v94
    %v102 = vpack.c.b16 %v97, %v96
    %v103 = vpack.c.b16 %v99, %v98
    %vm108 = vcmask 523264
    %v110 = vsel %vm108, %v71, 0
    %112 = vmatpush.bf16.msra.mxu0 0
    %113 = vmatpush.bf16.msra.mxu0 0
    %114 = vmatpush.bf16.msra.mxu0 0
    %115 = vmatpush.bf16.msra.mxu0 0
    %116 = vmatpush.bf16.msra.mxu0 %v103
    %117 = vmatpush.bf16.msra.mxu0 %v102
    %118 = vmatpush.bf16.msra.mxu0 %v101
    %119 = vmatpush.bf16.msra.mxu0 %v100
    %120 = vmatmul.bf16.gmra.mxu0 %v110
    %v121 = vpop.f32.mrf.mxu0
    %v122 = vadd.f32 %v82, %v121
    %v123 = vpop.f32.mrf.mxu0
    %v124 = vadd.f32 %v82, %v123
    %125 = vdwg.mxu0
    %v126 = vadd.f32 %v28, %v122
    %v127 = vadd.f32 %v29, %v124
    %v128 = vsel %vm51, %v126, 0.0
    %129 = vadd.xlane.f32.xlu0 %v128
    %v130 = vpop.xlane.xlu0 %129
    %v131 = vsel %vm51, %v127, 0.0
    %132 = vadd.xlane.f32.xlu0 %v131
    %v133 = vpop.xlane.xlu0 %132
    %v134 = vrcp.pop 32.0
    %v135 = vmul.f32 32.0, %v134
    %v136 = vsub.f32 1.0, %v135
    %v137 = vmul.f32 %v134, %v136
    %v138 = vadd.f32 %v134, %v137
    %vm139 = vweird.f32 %v134
    %v140 = vsel %vm139, %v134, %v138
    %v141 = vmul.f32 %v130, %v140
    %v142 = vmul.f32 %v133, %v140
    %v143 = vsub.f32 %v126, %v141
    %v144 = vsub.f32 %v127, %v142
    %v145 = vmul.f32 %v143, %v143
    %v146 = vmul.f32 %v144, %v144
    %v147 = vsel %vm51, %v145, 0.0
    %148 = vadd.xlane.f32.xlu0 %v147
    %v149 = vpop.xlane.xlu0 %148
    %v150 = vsel %vm51, %v146, 0.0
    %151 = vadd.xlane.f32.xlu0 %v150
    %v152 = vpop.xlane.xlu0 %151
    %v153 = vmul.f32 %v149, %v140
    %v154 = vmul.f32 %v152, %v140
    %v155 = vadd.f32 %v153, 1e-05
    %v156 = vadd.f32 %v154, 1e-05
    %v157 = vrsqrt.pop %v155
    %v158 = vmul.f32 %v157, %v155
    %v159 = vmul.f32 %v158, %v157
    %v160 = vmul.f32 0.5, %v159
    %v161 = vsub.f32 1.5, %v160
    %v162 = vmul.f32 %v157, %v161
    %vm163 = vweird.f32 %v155
    %vm164 = vweird.f32 %v157
    %vm165 = vmor %vm163, %vm164
    %v166 = vsel %vm165, %v157, %v162
    %v167 = vrsqrt.pop %v156
    %v168 = vmul.f32 %v167, %v156
    %v169 = vmul.f32 %v168, %v167
    %v170 = vmul.f32 0.5, %v169
    %v171 = vsub.f32 1.5, %v170
    %v172 = vmul.f32 %v167, %v171
    %vm173 = vweird.f32 %v156
    %vm174 = vweird.f32 %v167
    %vm175 = vmor %vm173, %vm174
    %v176 = vsel %vm175, %v167, %v172
    %v177 = vmul.f32 %v143, %v166
    %v178 = vmul.f32 %v144, %v176
    %v179 = vld [vmem:[%s5] sm:$0x1]
    %v181 = vperm.slane %v179, 0
    %v183 = vmul.f32 %v177, %v181
    %v184 = vmul.f32 %v178, %v181
    %v185 = vld [vmem:[%s6] sm:$0x1]
    %v187 = vperm.slane %v185, 0
    %v189 = vadd.f32 %v183, %v187
    %v190 = vadd.f32 %v184, %v187
    %191 = vst.msk [vmem:[#allocation2] sm:$0xff] %vm51, %v189
    %192 = vst.msk [vmem:[#allocation2 + $0x8] sm:$0xff] %vm51, %v190
    // Predicated region
    $region30: #{transformer_encoder_forward.15} parent=1 // pred_check
      _
    $region31: #{transformer_encoder_forward.15} parent=1 // pred_check_branch
      %194 = sbr.rel (0) target = $region33
    $region32: #{transformer_encoder_forward.15} parent=1 // pred_region
      %196 = vsyncadd [#allocation3], 0
      %s197 = sshll.u32 [#allocation2], 4
      %s198 = int_to_ptr.vmem [resolvable:$true] %s197
      %s199 = sshll.u32 %s7, 4
      %s200 = int_to_ptr.hbm [resolvable:$true] %s199
      %205 = dma.vmem_to_hbm [thread:$0]  %s198, 256, %s200, [#allocation3], 128, 128, 8
    $region33: #{transformer_encoder_forward.15} parent=1 // pred_fallthru
      _
    // Predicated region
    $region34: #{transformer_encoder_forward.15} parent=1 // pred_check
      _
    $region35: #{transformer_encoder_forward.15} parent=1 // pred_check_branch
      %207 = sbr.rel (0) target = $region37
    $region36: #{transformer_encoder_forward.15} parent=1 // pred_region
      %209 = dma.done [#allocation3], 256
    $region37: #{transformer_encoder_forward.15} parent=1 // pred_fallthru
      _
    %210 = vsyncpa [#allocation3], 1

</llo_original>
